<compile_context>
chip_gen: v6e
topology: v6e:2x2x1
jax: 0.10.0
libtpu: 0.0.40
codegen_flags: <defaults>
</compile_context>

<pallas_src>
import functools

import jax
import jax.numpy as jnp
from jax.experimental import pallas as pl
from jax.experimental.pallas import tpu as pltpu


def _conv_block_kernel(l2_ref, x_ref, w_ref, gamma_ref, beta_ref, out_ref,
                       *, K, B, V, Fpin, eps):
    """Chebyshev graph conv + BatchNorm1d (batch stats) + ReLU, fully fused.

    l2_ref:    (V, V)          2*L (recurrence pre-scale), matmul dtype (bf16)
    x_ref:     (V, B*Fpin)     batch-fused, lane-padded signal, matmul dtype
    w_ref:     (K, Fpin, Fp)   lane/row-padded Chebyshev weights, matmul dtype
    gamma_ref: (1, Fp)         BN affine scale (lane-padded), f32
    beta_ref:  (1, Fp)         BN affine shift (lane-padded), f32
    out_ref:   (B*V, Fp)       output, row = b*V + v, lane-dense, f32
    """
    mm_dtype = l2_ref.dtype
    L2 = l2_ref[...]                                   # (V, V) = 2*L
    Fp = out_ref.shape[-1]

    t_mm = x_ref[...]                                  # T_0, matmul dtype
    t_prev = None                                      # T_{k-1}, f32
    t_curr = t_mm.astype(jnp.float32)                  # T_k (k = 0), f32

    s1 = jnp.zeros((1, Fp), jnp.float32)               # BN running sums
    s2 = jnp.zeros((1, Fp), jnp.float32)

    for k in range(K):                                 # K small & static -> unrolled
        last = k == K - 1
        wk = w_ref[k]                                  # (Fpin, Fp)
        for b in range(B):                             # B small & static -> unrolled
            blk = t_mm[:, b * Fpin:(b + 1) * Fpin]     # lane-aligned slice
            contrib = jnp.dot(blk, wk, preferred_element_type=jnp.float32)
            if k == 0:
                acc = contrib                          # init (no scratch needed)
            else:
                acc = out_ref[b * V:(b + 1) * V, :] + contrib
            if last:
                # One-pass BN statistics while `acc` is still in vregs.
                # TODO(synk): switch to a shifted/Welford update if activations
                #             can have |mean| >> std (f32 cancellation risk).
                s1 = s1 + jnp.sum(acc, axis=0, keepdims=True)
                s2 = s2 + jnp.sum(acc * acc, axis=0, keepdims=True)
            out_ref[b * V:(b + 1) * V, :] = acc
        if not last:
            # Chebyshev recurrence with the 2x folded into L2:
            #   T_1 = 0.5 * (L2 @ T_0),   T_{k+1} = L2 @ T_k - T_{k-1}
            lt = jnp.dot(L2, t_mm, preferred_element_type=jnp.float32)
            t_next = 0.5 * lt if k == 0 else lt - t_prev
            t_prev, t_curr = t_curr, t_next
            t_mm = t_next.astype(mm_dtype)

    # --- BatchNorm1d (training-mode batch stats) + ReLU, in place. ---
    inv_n = 1.0 / float(B * V)
    mean = s1 * inv_n
    var = jnp.maximum(s2 * inv_n - mean * mean, 0.0)   # guard tiny cancellation
    scale = jax.lax.rsqrt(var + eps) * gamma_ref[...]  # fold gamma into the scale
    shift = beta_ref[...] - mean * scale
    out_ref[...] = jnp.maximum(out_ref[...] * scale + shift, 0.0)


def conv_block(x, laplacian, weight, bias, gamma, beta, eps=1e-5,
               matmul_dtype=jnp.bfloat16):
    """ConvBlock forward.  x: (B, V, Fin) -> (B, V, Fout)."""
    B, V, Fin = x.shape
    K, Fin2, Fout = weight.shape
    assert Fin == Fin2
    assert V % 8 == 0, "V must be a multiple of 8 (sublane alignment)"
    del bias  # per-channel bias is exactly cancelled by batch-stat BatchNorm.

    LANES = 128
    Fp = -(-Fout // LANES) * LANES                     # lane-dense output width
    Fpin = -(-Fin // LANES) * LANES                    # lane-aligned per-batch block
    f32 = jnp.float32

    # Batch-fused, lane-padded Chebyshev operand: (V, B*Fpin); block b holds
    # features [0, Fin) of batch b, remaining lanes are zero.
    x0 = jnp.zeros((V, B, Fpin), matmul_dtype)
    x0 = x0.at[:, :, :Fin].set(jnp.transpose(x, (1, 0, 2)).astype(matmul_dtype))
    x0 = x0.reshape(V, B * Fpin)

    lap2 = (2.0 * laplacian).astype(matmul_dtype)      # pre-scaled 2L
    # TODO(synk): on v7x consider fp8 (e4m3) for L under the 64 MiB VMEM budget.

    # Padded Chebyshev weights: (K, Fpin, Fp); zero rows above Fin, zero lanes
    # above Fout.
    w = jnp.zeros((K, Fpin, Fp), matmul_dtype)
    w = w.at[:, :Fin, :Fout].set(weight.astype(matmul_dtype))
    g = jnp.zeros((1, Fp), f32).at[0, :Fout].set(gamma.astype(f32))
    bta = jnp.zeros((1, Fp), f32).at[0, :Fout].set(beta.astype(f32))

    kern = functools.partial(_conv_block_kernel, K=K, B=B, V=V, Fpin=Fpin, eps=eps)
    vmem_spec = pl.BlockSpec(memory_space=pltpu.MemorySpace.VMEM)

    # --- VMEM budget: single-shot kernel, no grid => no double buffering. ---
    bpe = jnp.dtype(matmul_dtype).itemsize
    state_bytes = V * B * Fpin * 4                     # one f32 (V, B*Fpin) tensor
    io_bytes = int(V * V * bpe + V * B * Fpin * bpe + K * Fpin * Fp * bpe
                   + 2 * Fp * 4 + B * V * Fp * 4)
    footprint = io_bytes + 3 * state_bytes + V * Fp * 4
    try:
        cap = int(pltpu.get_tpu_info().vmem_capacity_bytes)
    except Exception:
        cap = 128 * 1024 * 1024
    vmem_bytes = max(min(int(footprint * 1.25) + (4 << 20), (cap * 3) // 4),
                     16 << 20)

    flops = int(2 * (K - 1) * V * V * (B * Fpin)       # Chebyshev L matmuls
                + 2 * K * B * V * Fpin * Fp            # fused weight matmuls
                + 10 * B * V * Fp)                     # BN + ReLU epilogue
    cost = pl.CostEstimate(flops=flops, transcendentals=int(Fp),
                           bytes_accessed=io_bytes)

    out = pl.pallas_call(
        kern,
        out_shape=jax.ShapeDtypeStruct((B * V, Fp), f32),
        in_specs=[vmem_spec] * 5,
        out_specs=vmem_spec,
        compiler_params=pltpu.CompilerParams(vmem_limit_bytes=int(vmem_bytes)),
        cost_estimate=cost,
    )(lap2, x0, w, g, bta)

    return out[:, :Fout].reshape(B, V, Fout)


def conv_block_reference(x, L, W, bias, gamma, beta, eps=1e-5):
    """Pure-JAX f32 reference matching PyTorch ConvBlock training-mode forward."""
    B, V, Fin = x.shape
    K, _, Fout = W.shape
    hi = jax.lax.Precision.HIGHEST
    xk = jnp.transpose(x, (1, 0, 2))                   # (V, B, Fin)
    basis = [xk]
    if K > 1:
        x1 = jnp.einsum("uv,vbf->ubf", L, xk, precision=hi)
        basis.append(x1)
        xm2, xm1 = xk, x1
        for _ in range(2, K):
            x2 = 2.0 * jnp.einsum("uv,vbf->ubf", L, xm1, precision=hi) - xm2
            basis.append(x2)
            xm2, xm1 = xm1, x2
    T = jnp.stack(basis, axis=0)                       # (K, V, B, Fin)
    y = jnp.einsum("kvbf,kfo->bvo", T, W, precision=hi) + bias
    mean = jnp.mean(y, axis=(0, 1), keepdims=True)
    var = jnp.mean((y - mean) ** 2, axis=(0, 1), keepdims=True)
    y = (y - mean) * jax.lax.rsqrt(var + eps)
    y = y * gamma + beta
    return jnp.maximum(y, 0.0)


if __name__ == "__main__":
    B, V, Fin, Fout, K = 2, 128, 4, 8, 3

    key = jax.random.PRNGKey(0)
    k1, k2, k3, k4, k5, k6 = jax.random.split(key, 6)

    x = jax.random.normal(k1, (B, V, Fin), jnp.float32)
    A = jax.random.normal(k2, (V, V), jnp.float32)
    L = (A + A.T) * 0.05                               # synthetic symmetric Laplacian
    W = jax.random.normal(k3, (K, Fin, Fout), jnp.float32) * 0.3
    bias = jax.random.normal(k4, (Fout,), jnp.float32) * 0.1
    gamma = 1.0 + 0.1 * jax.random.normal(k5, (Fout,), jnp.float32)
    beta = 0.1 * jax.random.normal(k6, (Fout,), jnp.float32)

    out = jax.block_until_ready(conv_block(x, L, W, bias, gamma, beta))
    ref = conv_block_reference(x, L, W, bias, gamma, beta)

    assert out.shape == (B, V, Fout), out.shape
    max_err = float(jnp.max(jnp.abs(out - ref)))
    # bf16 MXU path (L, x0, W) -> modest tolerance vs. the f32 reference.
    assert jnp.allclose(out, ref, rtol=5e-2, atol=5e-2), f"max_err={max_err}"
    print("KERNEL_OK")
</pallas_src>

<mosaic_0001>
module attributes {stable_mosaic.version = 11 : i64} {
  func.func @_conv_block_kernel(%arg0: memref<128x128xbf16, #tpu.memory_space<vmem>>, %arg1: memref<128x256xbf16, #tpu.memory_space<vmem>>, %arg2: memref<3x128x128xbf16, #tpu.memory_space<vmem>>, %arg3: memref<1x128xf32, #tpu.memory_space<vmem>>, %arg4: memref<1x128xf32, #tpu.memory_space<vmem>>, %arg5: memref<256x128xf32, #tpu.memory_space<vmem>>) attributes {dimension_semantics = [], scalar_prefetch = 0 : i64, scratch_operands = 0 : i64, tpu.core_type = #tpu.core_type<tc>} {
    %c0 = arith.constant 0 : index
    %c0_0 = arith.constant 0 : index
    %0 = vector.load %arg0[%c0, %c0_0] : memref<128x128xbf16, #tpu.memory_space<vmem>>, vector<128x128xbf16>
    %c0_1 = arith.constant 0 : index
    %c0_2 = arith.constant 0 : index
    %1 = vector.load %arg1[%c0_1, %c0_2] : memref<128x256xbf16, #tpu.memory_space<vmem>>, vector<128x256xbf16>
    %2 = arith.extf %1 : vector<128x256xbf16> to vector<128x256xf32>
    %cst = arith.constant 0.000000e+00 : f32
    %3 = vector.broadcast %cst : f32 to vector<1x128xf32>
    %cst_3 = arith.constant 0.000000e+00 : f32
    %4 = vector.broadcast %cst_3 : f32 to vector<1x128xf32>
    %c0_4 = arith.constant 0 : index
    %c0_5 = arith.constant 0 : index
    %c0_6 = arith.constant 0 : index
    %5 = vector.load %arg2[%c0_4, %c0_5, %c0_6] : memref<3x128x128xbf16, #tpu.memory_space<vmem>>, vector<1x128x128xbf16>
    %6 = vector.shape_cast %5 : vector<1x128x128xbf16> to vector<128x128xbf16>
    %7 = vector.extract_strided_slice %1 {offsets = [0, 0], sizes = [128, 128], strides = [1, 1]} : vector<128x256xbf16> to vector<128x128xbf16>
    %cst_7 = arith.constant dense<0.000000e+00> : vector<128x128xf32>
    %8 = tpu.matmul %7, %6, %cst_7 {dimension_numbers = #tpu.dot_dimension_numbers<[1], [0], [0], [1], [0, 0, 1, 1], [], []>} : vector<128x128xbf16>, vector<128x128xbf16>, vector<128x128xf32> -> vector<128x128xf32>
    %c0_8 = arith.constant 0 : index
    %c0_9 = arith.constant 0 : index
    %9 = vector.load %arg5[%c0_8, %c0_9] : memref<256x128xf32, #tpu.memory_space<vmem>>, vector<128x128xf32>
    tpu.vector_store %arg5[%c0_8, %c0_9], %8 {strides = array<i32>} : memref<256x128xf32, #tpu.memory_space<vmem>>, vector<128x128xf32>,
    %10 = vector.extract_strided_slice %1 {offsets = [0, 128], sizes = [128, 128], strides = [1, 1]} : vector<128x256xbf16> to vector<128x128xbf16>
    %cst_10 = arith.constant dense<0.000000e+00> : vector<128x128xf32>
    %11 = tpu.matmul %10, %6, %cst_10 {dimension_numbers = #tpu.dot_dimension_numbers<[1], [0], [0], [1], [0, 0, 1, 1], [], []>} : vector<128x128xbf16>, vector<128x128xbf16>, vector<128x128xf32> -> vector<128x128xf32>
    %c128 = arith.constant 128 : index
    %c0_11 = arith.constant 0 : index
    %12 = vector.load %arg5[%c128, %c0_11] : memref<256x128xf32, #tpu.memory_space<vmem>>, vector<128x128xf32>
    tpu.vector_store %arg5[%c128, %c0_11], %11 {strides = array<i32>} : memref<256x128xf32, #tpu.memory_space<vmem>>, vector<128x128xf32>,
    %cst_12 = arith.constant dense<0.000000e+00> : vector<128x256xf32>
    %13 = tpu.matmul %0, %1, %cst_12 {dimension_numbers = #tpu.dot_dimension_numbers<[1], [0], [0], [1], [0, 0, 1, 1], [], []>} : vector<128x128xbf16>, vector<128x256xbf16>, vector<128x256xf32> -> vector<128x256xf32>
    %cst_13 = arith.constant 5.000000e-01 : f32
    %14 = vector.broadcast %cst_13 : f32 to vector<128x256xf32>
    %15 = arith.mulf %14, %13 : vector<128x256xf32>
    %16 = arith.truncf %15 : vector<128x256xf32> to vector<128x256xbf16>
    %c1 = arith.constant 1 : index
    %c0_14 = arith.constant 0 : index
    %c0_15 = arith.constant 0 : index
    %17 = vector.load %arg2[%c1, %c0_14, %c0_15] : memref<3x128x128xbf16, #tpu.memory_space<vmem>>, vector<1x128x128xbf16>
    %18 = vector.shape_cast %17 : vector<1x128x128xbf16> to vector<128x128xbf16>
    %19 = vector.extract_strided_slice %16 {offsets = [0, 0], sizes = [128, 128], strides = [1, 1]} : vector<128x256xbf16> to vector<128x128xbf16>
    %cst_16 = arith.constant dense<0.000000e+00> : vector<128x128xf32>
    %20 = tpu.matmul %19, %18, %cst_16 {dimension_numbers = #tpu.dot_dimension_numbers<[1], [0], [0], [1], [0, 0, 1, 1], [], []>} : vector<128x128xbf16>, vector<128x128xbf16>, vector<128x128xf32> -> vector<128x128xf32>
    %c0_17 = arith.constant 0 : index
    %c0_18 = arith.constant 0 : index
    %21 = vector.load %arg5[%c0_17, %c0_18] : memref<256x128xf32, #tpu.memory_space<vmem>>, vector<128x128xf32>
    %22 = arith.addf %21, %20 : vector<128x128xf32>
    %c0_19 = arith.constant 0 : index
    %c0_20 = arith.constant 0 : index
    %23 = vector.load %arg5[%c0_19, %c0_20] : memref<256x128xf32, #tpu.memory_space<vmem>>, vector<128x128xf32>
    tpu.vector_store %arg5[%c0_19, %c0_20], %22 {strides = array<i32>} : memref<256x128xf32, #tpu.memory_space<vmem>>, vector<128x128xf32>,
    %24 = vector.extract_strided_slice %16 {offsets = [0, 128], sizes = [128, 128], strides = [1, 1]} : vector<128x256xbf16> to vector<128x128xbf16>
    %cst_21 = arith.constant dense<0.000000e+00> : vector<128x128xf32>
    %25 = tpu.matmul %24, %18, %cst_21 {dimension_numbers = #tpu.dot_dimension_numbers<[1], [0], [0], [1], [0, 0, 1, 1], [], []>} : vector<128x128xbf16>, vector<128x128xbf16>, vector<128x128xf32> -> vector<128x128xf32>
    %c128_22 = arith.constant 128 : index
    %c0_23 = arith.constant 0 : index
    %26 = vector.load %arg5[%c128_22, %c0_23] : memref<256x128xf32, #tpu.memory_space<vmem>>, vector<128x128xf32>
    %27 = arith.addf %26, %25 : vector<128x128xf32>
    %c128_24 = arith.constant 128 : index
    %c0_25 = arith.constant 0 : index
    %28 = vector.load %arg5[%c128_24, %c0_25] : memref<256x128xf32, #tpu.memory_space<vmem>>, vector<128x128xf32>
    tpu.vector_store %arg5[%c128_24, %c0_25], %27 {strides = array<i32>} : memref<256x128xf32, #tpu.memory_space<vmem>>, vector<128x128xf32>,
    %cst_26 = arith.constant dense<0.000000e+00> : vector<128x256xf32>
    %29 = tpu.matmul %0, %16, %cst_26 {dimension_numbers = #tpu.dot_dimension_numbers<[1], [0], [0], [1], [0, 0, 1, 1], [], []>} : vector<128x128xbf16>, vector<128x256xbf16>, vector<128x256xf32> -> vector<128x256xf32>
    %30 = arith.subf %29, %2 : vector<128x256xf32>
    %31 = arith.truncf %30 : vector<128x256xf32> to vector<128x256xbf16>
    %c2 = arith.constant 2 : index
    %c0_27 = arith.constant 0 : index
    %c0_28 = arith.constant 0 : index
    %32 = vector.load %arg2[%c2, %c0_27, %c0_28] : memref<3x128x128xbf16, #tpu.memory_space<vmem>>, vector<1x128x128xbf16>
    %33 = vector.shape_cast %32 : vector<1x128x128xbf16> to vector<128x128xbf16>
    %34 = vector.extract_strided_slice %31 {offsets = [0, 0], sizes = [128, 128], strides = [1, 1]} : vector<128x256xbf16> to vector<128x128xbf16>
    %cst_29 = arith.constant dense<0.000000e+00> : vector<128x128xf32>
    %35 = tpu.matmul %34, %33, %cst_29 {dimension_numbers = #tpu.dot_dimension_numbers<[1], [0], [0], [1], [0, 0, 1, 1], [], []>} : vector<128x128xbf16>, vector<128x128xbf16>, vector<128x128xf32> -> vector<128x128xf32>
    %c0_30 = arith.constant 0 : index
    %c0_31 = arith.constant 0 : index
    %36 = vector.load %arg5[%c0_30, %c0_31] : memref<256x128xf32, #tpu.memory_space<vmem>>, vector<128x128xf32>
    %37 = arith.addf %36, %35 : vector<128x128xf32>
    %cst_32 = arith.constant dense<0.000000e+00> : vector<128xf32>
    %38 = vector.multi_reduction <add>, %37, %cst_32 [0] : vector<128x128xf32> to vector<128xf32>
    %39 = vector.shape_cast %38 : vector<128xf32> to vector<1x128xf32>
    %40 = arith.addf %3, %39 : vector<1x128xf32>
    %41 = arith.mulf %37, %37 : vector<128x128xf32>
    %cst_33 = arith.constant dense<0.000000e+00> : vector<128xf32>
    %42 = vector.multi_reduction <add>, %41, %cst_33 [0] : vector<128x128xf32> to vector<128xf32>
    %43 = vector.shape_cast %42 : vector<128xf32> to vector<1x128xf32>
    %44 = arith.addf %4, %43 : vector<1x128xf32>
    %c0_34 = arith.constant 0 : index
    %c0_35 = arith.constant 0 : index
    %45 = vector.load %arg5[%c0_34, %c0_35] : memref<256x128xf32, #tpu.memory_space<vmem>>, vector<128x128xf32>
    tpu.vector_store %arg5[%c0_34, %c0_35], %37 {strides = array<i32>} : memref<256x128xf32, #tpu.memory_space<vmem>>, vector<128x128xf32>,
    %46 = vector.extract_strided_slice %31 {offsets = [0, 128], sizes = [128, 128], strides = [1, 1]} : vector<128x256xbf16> to vector<128x128xbf16>
    %cst_36 = arith.constant dense<0.000000e+00> : vector<128x128xf32>
    %47 = tpu.matmul %46, %33, %cst_36 {dimension_numbers = #tpu.dot_dimension_numbers<[1], [0], [0], [1], [0, 0, 1, 1], [], []>} : vector<128x128xbf16>, vector<128x128xbf16>, vector<128x128xf32> -> vector<128x128xf32>
    %c128_37 = arith.constant 128 : index
    %c0_38 = arith.constant 0 : index
    %48 = vector.load %arg5[%c128_37, %c0_38] : memref<256x128xf32, #tpu.memory_space<vmem>>, vector<128x128xf32>
    %49 = arith.addf %48, %47 : vector<128x128xf32>
    %cst_39 = arith.constant dense<0.000000e+00> : vector<128xf32>
    %50 = vector.multi_reduction <add>, %49, %cst_39 [0] : vector<128x128xf32> to vector<128xf32>
    %51 = vector.shape_cast %50 : vector<128xf32> to vector<1x128xf32>
    %52 = arith.addf %40, %51 : vector<1x128xf32>
    %53 = arith.mulf %49, %49 : vector<128x128xf32>
    %cst_40 = arith.constant dense<0.000000e+00> : vector<128xf32>
    %54 = vector.multi_reduction <add>, %53, %cst_40 [0] : vector<128x128xf32> to vector<128xf32>
    %55 = vector.shape_cast %54 : vector<128xf32> to vector<1x128xf32>
    %56 = arith.addf %44, %55 : vector<1x128xf32>
    %c128_41 = arith.constant 128 : index
    %c0_42 = arith.constant 0 : index
    %57 = vector.load %arg5[%c128_41, %c0_42] : memref<256x128xf32, #tpu.memory_space<vmem>>, vector<128x128xf32>
    tpu.vector_store %arg5[%c128_41, %c0_42], %49 {strides = array<i32>} : memref<256x128xf32, #tpu.memory_space<vmem>>, vector<128x128xf32>,
    %cst_43 = arith.constant 3.906250e-03 : f32
    %58 = vector.broadcast %cst_43 : f32 to vector<1x128xf32>
    %59 = arith.mulf %52, %58 : vector<1x128xf32>
    %cst_44 = arith.constant 3.906250e-03 : f32
    %60 = vector.broadcast %cst_44 : f32 to vector<1x128xf32>
    %61 = arith.mulf %56, %60 : vector<1x128xf32>
    %62 = arith.mulf %59, %59 : vector<1x128xf32>
    %63 = arith.subf %61, %62 : vector<1x128xf32>
    %cst_45 = arith.constant 0.000000e+00 : f32
    %64 = vector.broadcast %cst_45 : f32 to vector<1x128xf32>
    %65 = arith.maximumf %63, %64 : vector<1x128xf32>
    %cst_46 = arith.constant 9.99999974E-6 : f32
    %66 = vector.broadcast %cst_46 : f32 to vector<1x128xf32>
    %67 = arith.addf %65, %66 : vector<1x128xf32>
    %68 = math.rsqrt %67 : vector<1x128xf32>
    %c0_47 = arith.constant 0 : index
    %c0_48 = arith.constant 0 : index
    %69 = vector.load %arg3[%c0_47, %c0_48] : memref<1x128xf32, #tpu.memory_space<vmem>>, vector<1x128xf32>
    %70 = arith.mulf %68, %69 : vector<1x128xf32>
    %c0_49 = arith.constant 0 : index
    %c0_50 = arith.constant 0 : index
    %71 = vector.load %arg4[%c0_49, %c0_50] : memref<1x128xf32, #tpu.memory_space<vmem>>, vector<1x128xf32>
    %72 = arith.mulf %59, %70 : vector<1x128xf32>
    %73 = arith.subf %71, %72 : vector<1x128xf32>
    %c0_51 = arith.constant 0 : index
    %c0_52 = arith.constant 0 : index
    %74 = vector.load %arg5[%c0_51, %c0_52] : memref<256x128xf32, #tpu.memory_space<vmem>>, vector<256x128xf32>
    %75 = vector.broadcast %70 : vector<1x128xf32> to vector<256x128xf32>
    %76 = arith.mulf %74, %75 : vector<256x128xf32>
    %77 = vector.broadcast %73 : vector<1x128xf32> to vector<256x128xf32>
    %78 = arith.addf %76, %77 : vector<256x128xf32>
    %cst_53 = arith.constant 0.000000e+00 : f32
    %79 = vector.broadcast %cst_53 : f32 to vector<256x128xf32>
    %80 = arith.maximumf %78, %79 : vector<256x128xf32>
    %c0_54 = arith.constant 0 : index
    %c0_55 = arith.constant 0 : index
    %81 = vector.load %arg5[%c0_54, %c0_55] : memref<256x128xf32, #tpu.memory_space<vmem>>, vector<256x128xf32>
    tpu.vector_store %arg5[%c0_54, %c0_55], %80 {strides = array<i32>} : memref<256x128xf32, #tpu.memory_space<vmem>>, vector<256x128xf32>,
    return
  }
}

</mosaic_0001>

<llo_original>
// kernel: tpu_custom_call.1
$region0: #{tpu_custom_call.1}
  #allocation0 [shape = 'u32[]', space=smem, size = 0x4, offset = 0x4, fixed_abs, tag = 'smem constant byte address 0x4 - core index']
  #allocation1 [shape = 'u32[144,128]{1,0:T(1,128)}', space=vmem, size = 0x12000, scoped, tag = 'internal scratch']
  %s0 = inlined_call_operand.hbm [shape: bf16[128,128], index: 0, kind: input, shape index: {}]
  %s1 = inlined_call_operand.hbm [shape: bf16[128,256], index: 1, kind: input, shape index: {}]
  %s2 = inlined_call_operand.hbm [shape: bf16[3,128,128], index: 2, kind: input, shape index: {}]
  %s3 = inlined_call_operand.vmem [shape: f32[1,128], index: 3, kind: input, shape index: {}]
  %s4 = inlined_call_operand.vmem [shape: f32[1,128], index: 4, kind: input, shape index: {}]
  %s5 = inlined_call_operand.hbm [shape: f32[256,128], index: 5, kind: output, shape index: {}]
  %s6 = sld [smem:[#allocation0]]
  $region42: #{tpu_custom_call.1} parent=0
    _
  %s8 = ssub.s32 1, %s6
  %s9 = scalar_select 0, %s8, %s6
  $region1: #{tpu_custom_call.1} parent=0
    #allocation2 [shape = 'u8[32768]{0}', space=vmem, size = 0x8000, scoped, tag = 'input window, operand 0, single buffered']
    #allocation3 [shape = 's32[1]{0}', space=sflag, size = 0x4, scoped, tag = 'scoped memory for tpu_custom_call.1']
    #allocation4 [shape = 's32[1]{0}', space=sflag, size = 0x4, scoped, tag = 'scoped memory for tpu_custom_call.1']
    #allocation5 [shape = 'u8[65536]{0}', space=vmem, size = 0x10000, scoped, tag = 'input window, operand 1, single buffered']
    #allocation6 [shape = 's32[1]{0}', space=sflag, size = 0x4, scoped, tag = 'scoped memory for tpu_custom_call.1']
    #allocation7 [shape = 'u8[98304]{0}', space=vmem, size = 0x18000, scoped, tag = 'input window, operand 2, single buffered']
    #allocation8 [shape = 'u8[131072]{0}', space=vmem, size = 0x20000, scoped, tag = 'output window, operand 0, single buffered']
    %10 = vsyncpa [#allocation3], 0
    %11 = vsyncpa [#allocation6], 0
    %12 = vsyncpa [#allocation4], 0
    // Predicated region
    $region2: #{tpu_custom_call.1} parent=1 // pred_check
      _
    $region3: #{tpu_custom_call.1} parent=1 // pred_check_branch
      %14 = sbr.rel (0) target = $region5
    $region4: #{tpu_custom_call.1} parent=1 // pred_region
      %s16 = ssub.s32 1024, 1024
      %17 = vsyncadd [#allocation3], %s16
      %s18 = sshll.u32 [#allocation2], 4
      %s19 = int_to_ptr.vmem [resolvable:$true] %s18
      %24 = dma.hbm_to_vmem [thread:$0]  %s0, 1024, %s19, [#allocation3], 64, 64, 4
    $region5: #{tpu_custom_call.1} parent=1 // pred_fallthru
      _
    // Predicated region
    $region6: #{tpu_custom_call.1} parent=1 // pred_check
      _
    $region7: #{tpu_custom_call.1} parent=1 // pred_check_branch
      %26 = sbr.rel (0) target = $region9
    $region8: #{tpu_custom_call.1} parent=1 // pred_region
      %s28 = ssub.s32 2048, 2048
      %29 = vsyncadd [#allocation6], %s28
      %s30 = sshll.u32 [#allocation5], 4
      %s31 = int_to_ptr.vmem [resolvable:$true] %s30
      %36 = dma.hbm_to_vmem [thread:$0]  %s1, 2048, %s31, [#allocation6], 128, 128, 8
    $region9: #{tpu_custom_call.1} parent=1 // pred_fallthru
      _
    // Predicated region
    $region10: #{tpu_custom_call.1} parent=1 // pred_check
      _
    $region11: #{tpu_custom_call.1} parent=1 // pred_check_branch
      %38 = sbr.rel (0) target = $region13
    $region12: #{tpu_custom_call.1} parent=1 // pred_region
      %s40 = ssub.s32 3072, 3072
      %41 = vsyncadd [#allocation6], %s40
      %s42 = sshll.u32 [#allocation7], 4
      %s43 = int_to_ptr.vmem [resolvable:$true] %s42
      %48 = dma.hbm_to_vmem [thread:$0]  %s2, 3072, %s43, [#allocation6], 64, 64, 4
    $region13: #{tpu_custom_call.1} parent=1 // pred_fallthru
      _
    // Predicated region
    $region14: #{tpu_custom_call.1} parent=1 // pred_check
      _
    $region15: #{tpu_custom_call.1} parent=1 // pred_check_branch
      %50 = sbr.rel (0) target = $region17
    $region16: #{tpu_custom_call.1} parent=1 // pred_region
      _
    $region17: #{tpu_custom_call.1} parent=1 // pred_fallthru
      _
    // Predicated region
    $region18: #{tpu_custom_call.1} parent=1 // pred_check
      _
    $region19: #{tpu_custom_call.1} parent=1 // pred_check_branch
      %52 = sbr.rel (0) target = $region21
    $region20: #{tpu_custom_call.1} parent=1 // pred_region
      _
    $region21: #{tpu_custom_call.1} parent=1 // pred_fallthru
      _
    // Predicated region
    $region22: #{tpu_custom_call.1} parent=1 // pred_check
      _
    $region23: #{tpu_custom_call.1} parent=1 // pred_check_branch
      %54 = sbr.rel (0) target = $region25
    $region24: #{tpu_custom_call.1} parent=1 // pred_region
      %55 = dma.done [#allocation3], 1024
    $region25: #{tpu_custom_call.1} parent=1 // pred_fallthru
      _
    // Predicated region
    $region26: #{tpu_custom_call.1} parent=1 // pred_check
      _
    $region27: #{tpu_custom_call.1} parent=1 // pred_check_branch
      %57 = sbr.rel (0) target = $region29
    $region28: #{tpu_custom_call.1} parent=1 // pred_region
      %58 = dma.done [#allocation6], 2048
    $region29: #{tpu_custom_call.1} parent=1 // pred_fallthru
      _
    // Predicated region
    $region30: #{tpu_custom_call.1} parent=1 // pred_check
      _
    $region31: #{tpu_custom_call.1} parent=1 // pred_check_branch
      %60 = sbr.rel (0) target = $region33
    $region32: #{tpu_custom_call.1} parent=1 // pred_region
      %61 = dma.done [#allocation6], 3072
    $region33: #{tpu_custom_call.1} parent=1 // pred_fallthru
      _
    %v63 = vld [vmem:[#allocation2] sm:$0xf]
    %v64 = vld [vmem:[#allocation2 + $0x4] sm:$0xf]
    %v65 = vld [vmem:[#allocation2 + $0x8] sm:$0xf]
    %v66 = vld [vmem:[#allocation2 + $0xc] sm:$0xf]
    %v67 = vld [vmem:[#allocation2 + $0x10] sm:$0xf]
    %v68 = vld [vmem:[#allocation2 + $0x14] sm:$0xf]
    %v69 = vld [vmem:[#allocation2 + $0x18] sm:$0xf]
    %v70 = vld [vmem:[#allocation2 + $0x1c] sm:$0xf]
    %v71 = vld [vmem:[#allocation2 + $0x20] sm:$0xf]
    %v72 = vld [vmem:[#allocation2 + $0x24] sm:$0xf]
    %v73 = vld [vmem:[#allocation2 + $0x28] sm:$0xf]
    %v74 = vld [vmem:[#allocation2 + $0x2c] sm:$0xf]
    %v75 = vld [vmem:[#allocation2 + $0x30] sm:$0xf]
    %v76 = vld [vmem:[#allocation2 + $0x34] sm:$0xf]
    %v77 = vld [vmem:[#allocation2 + $0x38] sm:$0xf]
    %v78 = vld [vmem:[#allocation2 + $0x3c] sm:$0xf]
    %v79 = vld [vmem:[#allocation5] sm:$0xff]
    %v80 = vld [vmem:[#allocation5 + $0x8] sm:$0xff]
    %v81 = vld [vmem:[#allocation5 + $0x10] sm:$0xff]
    %v82 = vld [vmem:[#allocation5 + $0x18] sm:$0xff]
    %v83 = vld [vmem:[#allocation5 + $0x20] sm:$0xff]
    %v84 = vld [vmem:[#allocation5 + $0x28] sm:$0xff]
    %v85 = vld [vmem:[#allocation5 + $0x30] sm:$0xff]
    %v86 = vld [vmem:[#allocation5 + $0x38] sm:$0xff]
    %v87 = vld [vmem:[#allocation5 + $0x40] sm:$0xff]
    %v88 = vld [vmem:[#allocation5 + $0x48] sm:$0xff]
    %v89 = vld [vmem:[#allocation5 + $0x50] sm:$0xff]
    %v90 = vld [vmem:[#allocation5 + $0x58] sm:$0xff]
    %v91 = vld [vmem:[#allocation5 + $0x60] sm:$0xff]
    %v92 = vld [vmem:[#allocation5 + $0x68] sm:$0xff]
    %v93 = vld [vmem:[#allocation5 + $0x70] sm:$0xff]
    %v94 = vld [vmem:[#allocation5 + $0x78] sm:$0xff]
    %v95 = vunpack.c.l.bf16 %v79
    %v96 = vunpack.c.h.bf16 %v79
    %v97 = vunpack.c.l.bf16 %v80
    %v98 = vunpack.c.h.bf16 %v80
    %v99 = vunpack.c.l.bf16 %v81
    %v100 = vunpack.c.h.bf16 %v81
    %v101 = vunpack.c.l.bf16 %v82
    %v102 = vunpack.c.h.bf16 %v82
    %v103 = vunpack.c.l.bf16 %v83
    %v104 = vunpack.c.h.bf16 %v83
    %v105 = vunpack.c.l.bf16 %v84
    %v106 = vunpack.c.h.bf16 %v84
    %v107 = vunpack.c.l.bf16 %v85
    %v108 = vunpack.c.h.bf16 %v85
    %v109 = vunpack.c.l.bf16 %v86
    %v110 = vunpack.c.h.bf16 %v86
    %v111 = vunpack.c.l.bf16 %v87
    %v112 = vunpack.c.h.bf16 %v87
    %v113 = vunpack.c.l.bf16 %v88
    %v114 = vunpack.c.h.bf16 %v88
    %v115 = vunpack.c.l.bf16 %v89
    %v116 = vunpack.c.h.bf16 %v89
    %v117 = vunpack.c.l.bf16 %v90
    %v118 = vunpack.c.h.bf16 %v90
    %v119 = vunpack.c.l.bf16 %v91
    %v120 = vunpack.c.h.bf16 %v91
    %v121 = vunpack.c.l.bf16 %v92
    %v122 = vunpack.c.h.bf16 %v92
    %v123 = vunpack.c.l.bf16 %v93
    %v124 = vunpack.c.h.bf16 %v93
    %v125 = vunpack.c.l.bf16 %v94
    %v126 = vunpack.c.h.bf16 %v94
    %v127 = vld [vmem:[#allocation7] sm:$0xf]
    %v128 = vld [vmem:[#allocation7 + $0x4] sm:$0xf]
    %v129 = vld [vmem:[#allocation7 + $0x8] sm:$0xf]
    %v130 = vld [vmem:[#allocation7 + $0xc] sm:$0xf]
    %v131 = vld [vmem:[#allocation7 + $0x10] sm:$0xf]
    %v132 = vld [vmem:[#allocation7 + $0x14] sm:$0xf]
    %v133 = vld [vmem:[#allocation7 + $0x18] sm:$0xf]
    %v134 = vld [vmem:[#allocation7 + $0x1c] sm:$0xf]
    %v135 = vld [vmem:[#allocation7 + $0x20] sm:$0xf]
    %v136 = vld [vmem:[#allocation7 + $0x24] sm:$0xf]
    %v137 = vld [vmem:[#allocation7 + $0x28] sm:$0xf]
    %v138 = vld [vmem:[#allocation7 + $0x2c] sm:$0xf]
    %v139 = vld [vmem:[#allocation7 + $0x30] sm:$0xf]
    %v140 = vld [vmem:[#allocation7 + $0x34] sm:$0xf]
    %v141 = vld [vmem:[#allocation7 + $0x38] sm:$0xf]
    %v142 = vld [vmem:[#allocation7 + $0x3c] sm:$0xf]
    %v159 = vunpack.c.l.b16 %v79
    %v160 = vunpack.c.l.b16 %v80
    %v161 = vunpack.c.l.b16 %v81
    %v162 = vunpack.c.l.b16 %v82
    %v163 = vunpack.c.l.b16 %v83
    %v164 = vunpack.c.l.b16 %v84
    %v165 = vunpack.c.l.b16 %v85
    %v166 = vunpack.c.l.b16 %v86
    %v167 = vunpack.c.l.b16 %v87
    %v168 = vunpack.c.l.b16 %v88
    %v169 = vunpack.c.l.b16 %v89
    %v170 = vunpack.c.l.b16 %v90
    %v171 = vunpack.c.l.b16 %v91
    %v172 = vunpack.c.l.b16 %v92
    %v173 = vunpack.c.l.b16 %v93
    %v174 = vunpack.c.l.b16 %v94
    %v175 = vpack.c.b16 %v160, %v159
    %v176 = vpack.c.b16 %v162, %v161
    %v177 = vpack.c.b16 %v164, %v163
    %v178 = vpack.c.b16 %v166, %v165
    %v179 = vpack.c.b16 %v168, %v167
    %v180 = vpack.c.b16 %v170, %v169
    %v181 = vpack.c.b16 %v172, %v171
    %v182 = vpack.c.b16 %v174, %v173
    %v207 = vunpack.c.l.b16 %v127
    %v208 = vunpack.c.l.b16 %v128
    %v209 = vunpack.c.l.b16 %v129
    %v210 = vunpack.c.l.b16 %v130
    %v211 = vunpack.c.l.b16 %v131
    %v212 = vunpack.c.l.b16 %v132
    %v213 = vunpack.c.l.b16 %v133
    %v214 = vunpack.c.l.b16 %v134
    %v215 = vunpack.c.l.b16 %v135
    %v216 = vunpack.c.l.b16 %v136
    %v217 = vunpack.c.l.b16 %v137
    %v218 = vunpack.c.l.b16 %v138
    %v219 = vunpack.c.l.b16 %v139
    %v220 = vunpack.c.l.b16 %v140
    %v221 = vunpack.c.l.b16 %v141
    %v222 = vunpack.c.l.b16 %v142
    %v223 = vpack.c.b16 %v208, %v207
    %v224 = vpack.c.b16 %v210, %v209
    %v225 = vpack.c.b16 %v212, %v211
    %v226 = vpack.c.b16 %v214, %v213
    %v227 = vpack.c.b16 %v216, %v215
    %v228 = vpack.c.b16 %v218, %v217
    %v229 = vpack.c.b16 %v220, %v219
    %v230 = vpack.c.b16 %v222, %v221
    %239 = vmatprep.subr.bf16.mxu0 0
    %240 = vmatpush1.bf16.msra.mxu0 %v230
    %241 = vmatprep.subr.bf16.mxu0 0
    %242 = vmatpush1.bf16.msra.mxu0 %v229
    %243 = vmatprep.subr.bf16.mxu0 0
    %244 = vmatpush1.bf16.msra.mxu0 %v228
    %245 = vmatprep.subr.bf16.mxu0 0
    %246 = vmatpush1.bf16.msra.mxu0 %v227
    %247 = vmatprep.subr.bf16.mxu0 0
    %248 = vmatpush1.bf16.msra.mxu0 %v226
    %249 = vmatprep.subr.bf16.mxu0 0
    %250 = vmatpush1.bf16.msra.mxu0 %v225
    %251 = vmatprep.subr.bf16.mxu0 0
    %252 = vmatpush1.bf16.msra.mxu0 %v224
    %253 = vmatprep.subr.bf16.mxu0 0
    %254 = vmatpush1.bf16.msra.mxu0 %v223
    %255 = vmatprep.subr.bf16.mxu0 0
    %256 = vmatpush2.bf16.msra.mxu0 0
    %257 = vmatprep.subr.bf16.mxu0 0
    %258 = vmatpush2.bf16.msra.mxu0 0
    %259 = vmatprep.subr.bf16.mxu0 0
    %260 = vmatpush2.bf16.msra.mxu0 0
    %261 = vmatprep.subr.bf16.mxu0 0
    %262 = vmatpush2.bf16.msra.mxu0 0
    %263 = vmatprep.subr.bf16.mxu0 0
    %264 = vmatpush2.bf16.msra.mxu0 0
    %265 = vmatprep.subr.bf16.mxu0 0
    %266 = vmatpush2.bf16.msra.mxu0 0
    %267 = vmatprep.subr.bf16.mxu0 0
    %268 = vmatpush2.bf16.msra.mxu0 0
    %269 = vmatprep.subr.bf16.mxu0 0
    %270 = vmatpush2.bf16.msra.mxu0 0
    %271 = vmatprep.mubr.bf16.mxu0 0
    %272 = vmatmul.mubr.bf16.gmra.mxu0 %v175
    %v273 = vpop.f32.mrf.mxu0
    %v274 = vadd.f32 0.0, %v273
    %v275 = vpop.f32.mrf.mxu0
    %v276 = vpop.f32.mrf.mxu0
    %v277 = vadd.f32 0.0, %v276
    %v278 = vpop.f32.mrf.mxu0
    %279 = vmatprep.mubr.bf16.mxu0 0
    %280 = vmatmul.mubr.bf16.gmra.mxu0 %v176
    %v281 = vpop.f32.mrf.mxu0
    %v282 = vadd.f32 0.0, %v281
    %v283 = vpop.f32.mrf.mxu0
    %v284 = vpop.f32.mrf.mxu0
    %v285 = vadd.f32 0.0, %v284
    %v286 = vpop.f32.mrf.mxu0
    %287 = vmatprep.mubr.bf16.mxu0 0
    %288 = vmatmul.mubr.bf16.gmra.mxu0 %v177
    %v289 = vpop.f32.mrf.mxu0
    %v290 = vadd.f32 0.0, %v289
    %v291 = vpop.f32.mrf.mxu0
    %v292 = vpop.f32.mrf.mxu0
    %v293 = vadd.f32 0.0, %v292
    %v294 = vpop.f32.mrf.mxu0
    %295 = vmatprep.mubr.bf16.mxu0 0
    %296 = vmatmul.mubr.bf16.gmra.mxu0 %v178
    %v297 = vpop.f32.mrf.mxu0
    %v298 = vadd.f32 0.0, %v297
    %v299 = vpop.f32.mrf.mxu0
    %v300 = vpop.f32.mrf.mxu0
    %v301 = vadd.f32 0.0, %v300
    %v302 = vpop.f32.mrf.mxu0
    %303 = vmatprep.mubr.bf16.mxu0 0
    %304 = vmatmul.mubr.bf16.gmra.mxu0 %v179
    %v305 = vpop.f32.mrf.mxu0
    %v306 = vadd.f32 0.0, %v305
    %v307 = vpop.f32.mrf.mxu0
    %v308 = vpop.f32.mrf.mxu0
    %v309 = vadd.f32 0.0, %v308
    %v310 = vpop.f32.mrf.mxu0
    %311 = vmatprep.mubr.bf16.mxu0 0
    %312 = vmatmul.mubr.bf16.gmra.mxu0 %v180
    %v313 = vpop.f32.mrf.mxu0
    %v314 = vadd.f32 0.0, %v313
    %v315 = vpop.f32.mrf.mxu0
    %v316 = vpop.f32.mrf.mxu0
    %v317 = vadd.f32 0.0, %v316
    %v318 = vpop.f32.mrf.mxu0
    %319 = vmatprep.mubr.bf16.mxu0 0
    %320 = vmatmul.mubr.bf16.gmra.mxu0 %v181
    %v321 = vpop.f32.mrf.mxu0
    %v322 = vadd.f32 0.0, %v321
    %v323 = vpop.f32.mrf.mxu0
    %v324 = vpop.f32.mrf.mxu0
    %v325 = vadd.f32 0.0, %v324
    %v326 = vpop.f32.mrf.mxu0
    %327 = vmatprep.mubr.bf16.mxu0 0
    %328 = vmatmul.mubr.bf16.gmra.mxu0 %v182
    %v329 = vpop.f32.mrf.mxu0
    %v330 = vadd.f32 0.0, %v329
    %v331 = vpop.f32.mrf.mxu0
    %v332 = vpop.f32.mrf.mxu0
    %v333 = vadd.f32 0.0, %v332
    %v334 = vpop.f32.mrf.mxu0
    %335 = vdwg.mxu0
    %336 = vst [vmem:[#allocation8] sm:$0xff] %v274
    %337 = vst [vmem:[#allocation8 + $0x8] sm:$0xff] %v277
    %338 = vst [vmem:[#allocation8 + $0x10] sm:$0xff] %v282
    %339 = vst [vmem:[#allocation8 + $0x18] sm:$0xff] %v285
    %340 = vst [vmem:[#allocation8 + $0x20] sm:$0xff] %v290
    %341 = vst [vmem:[#allocation8 + $0x28] sm:$0xff] %v293
    %342 = vst [vmem:[#allocation8 + $0x30] sm:$0xff] %v298
    %343 = vst [vmem:[#allocation8 + $0x38] sm:$0xff] %v301
    %344 = vst [vmem:[#allocation8 + $0x40] sm:$0xff] %v306
    %345 = vst [vmem:[#allocation8 + $0x48] sm:$0xff] %v309
    %346 = vst [vmem:[#allocation8 + $0x50] sm:$0xff] %v314
    %347 = vst [vmem:[#allocation8 + $0x58] sm:$0xff] %v317
    %348 = vst [vmem:[#allocation8 + $0x60] sm:$0xff] %v322
    %349 = vst [vmem:[#allocation8 + $0x68] sm:$0xff] %v325
    %350 = vst [vmem:[#allocation8 + $0x70] sm:$0xff] %v330
    %351 = vst [vmem:[#allocation8 + $0x78] sm:$0xff] %v333
    %v352 = vunpack.c.h.b16 %v79
    %v353 = vunpack.c.h.b16 %v80
    %v354 = vunpack.c.h.b16 %v81
    %v355 = vunpack.c.h.b16 %v82
    %v356 = vunpack.c.h.b16 %v83
    %v357 = vunpack.c.h.b16 %v84
    %v358 = vunpack.c.h.b16 %v85
    %v359 = vunpack.c.h.b16 %v86
    %v360 = vunpack.c.h.b16 %v87
    %v361 = vunpack.c.h.b16 %v88
    %v362 = vunpack.c.h.b16 %v89
    %v363 = vunpack.c.h.b16 %v90
    %v364 = vunpack.c.h.b16 %v91
    %v365 = vunpack.c.h.b16 %v92
    %v366 = vunpack.c.h.b16 %v93
    %v367 = vunpack.c.h.b16 %v94
    %v368 = vpack.c.b16 %v353, %v352
    %v369 = vpack.c.b16 %v355, %v354
    %v370 = vpack.c.b16 %v357, %v356
    %v371 = vpack.c.b16 %v359, %v358
    %v372 = vpack.c.b16 %v361, %v360
    %v373 = vpack.c.b16 %v363, %v362
    %v374 = vpack.c.b16 %v365, %v364
    %v375 = vpack.c.b16 %v367, %v366
    %384 = vmatprep.subr.bf16.mxu0 0
    %385 = vmatpush1.bf16.msra.mxu0 %v230
    %386 = vmatprep.subr.bf16.mxu0 0
    %387 = vmatpush1.bf16.msra.mxu0 %v229
    %388 = vmatprep.subr.bf16.mxu0 0
    %389 = vmatpush1.bf16.msra.mxu0 %v228
    %390 = vmatprep.subr.bf16.mxu0 0
    %391 = vmatpush1.bf16.msra.mxu0 %v227
    %392 = vmatprep.subr.bf16.mxu0 0
    %393 = vmatpush1.bf16.msra.mxu0 %v226
    %394 = vmatprep.subr.bf16.mxu0 0
    %395 = vmatpush1.bf16.msra.mxu0 %v225
    %396 = vmatprep.subr.bf16.mxu0 0
    %397 = vmatpush1.bf16.msra.mxu0 %v224
    %398 = vmatprep.subr.bf16.mxu0 0
    %399 = vmatpush1.bf16.msra.mxu0 %v223
    %400 = vmatprep.subr.bf16.mxu0 0
    %401 = vmatpush2.bf16.msra.mxu0 0
    %402 = vmatprep.subr.bf16.mxu0 0
    %403 = vmatpush2.bf16.msra.mxu0 0
    %404 = vmatprep.subr.bf16.mxu0 0
    %405 = vmatpush2.bf16.msra.mxu0 0
    %406 = vmatprep.subr.bf16.mxu0 0
    %407 = vmatpush2.bf16.msra.mxu0 0
    %408 = vmatprep.subr.bf16.mxu0 0
    %409 = vmatpush2.bf16.msra.mxu0 0
    %410 = vmatprep.subr.bf16.mxu0 0
    %411 = vmatpush2.bf16.msra.mxu0 0
    %412 = vmatprep.subr.bf16.mxu0 0
    %413 = vmatpush2.bf16.msra.mxu0 0
    %414 = vmatprep.subr.bf16.mxu0 0
    %415 = vmatpush2.bf16.msra.mxu0 0
    %416 = vmatprep.mubr.bf16.mxu0 0
    %417 = vmatmul.mubr.bf16.gmra.mxu0 %v368
    %v418 = vpop.f32.mrf.mxu0
    %v419 = vadd.f32 0.0, %v418
    %v420 = vpop.f32.mrf.mxu0
    %v421 = vpop.f32.mrf.mxu0
    %v422 = vadd.f32 0.0, %v421
    %v423 = vpop.f32.mrf.mxu0
    %424 = vmatprep.mubr.bf16.mxu0 0
    %425 = vmatmul.mubr.bf16.gmra.mxu0 %v369
    %v426 = vpop.f32.mrf.mxu0
    %v427 = vadd.f32 0.0, %v426
    %v428 = vpop.f32.mrf.mxu0
    %v429 = vpop.f32.mrf.mxu0
    %v430 = vadd.f32 0.0, %v429
    %v431 = vpop.f32.mrf.mxu0
    %432 = vmatprep.mubr.bf16.mxu0 0
    %433 = vmatmul.mubr.bf16.gmra.mxu0 %v370
    %v434 = vpop.f32.mrf.mxu0
    %v435 = vadd.f32 0.0, %v434
    %v436 = vpop.f32.mrf.mxu0
    %v437 = vpop.f32.mrf.mxu0
    %v438 = vadd.f32 0.0, %v437
    %v439 = vpop.f32.mrf.mxu0
    %440 = vmatprep.mubr.bf16.mxu0 0
    %441 = vmatmul.mubr.bf16.gmra.mxu0 %v371
    %v442 = vpop.f32.mrf.mxu0
    %v443 = vadd.f32 0.0, %v442
    %v444 = vpop.f32.mrf.mxu0
    %v445 = vpop.f32.mrf.mxu0
    %v446 = vadd.f32 0.0, %v445
    %v447 = vpop.f32.mrf.mxu0
    %448 = vmatprep.mubr.bf16.mxu0 0
    %449 = vmatmul.mubr.bf16.gmra.mxu0 %v372
    %v450 = vpop.f32.mrf.mxu0
    %v451 = vadd.f32 0.0, %v450
    %v452 = vpop.f32.mrf.mxu0
    %v453 = vpop.f32.mrf.mxu0
    %v454 = vadd.f32 0.0, %v453
    %v455 = vpop.f32.mrf.mxu0
    %456 = vmatprep.mubr.bf16.mxu0 0
    %457 = vmatmul.mubr.bf16.gmra.mxu0 %v373
    %v458 = vpop.f32.mrf.mxu0
    %v459 = vadd.f32 0.0, %v458
    %v460 = vpop.f32.mrf.mxu0
    %v461 = vpop.f32.mrf.mxu0
    %v462 = vadd.f32 0.0, %v461
    %v463 = vpop.f32.mrf.mxu0
    %464 = vmatprep.mubr.bf16.mxu0 0
    %465 = vmatmul.mubr.bf16.gmra.mxu0 %v374
    %v466 = vpop.f32.mrf.mxu0
    %v467 = vadd.f32 0.0, %v466
    %v468 = vpop.f32.mrf.mxu0
    %v469 = vpop.f32.mrf.mxu0
    %v470 = vadd.f32 0.0, %v469
    %v471 = vpop.f32.mrf.mxu0
    %472 = vmatprep.mubr.bf16.mxu0 0
    %473 = vmatmul.mubr.bf16.gmra.mxu0 %v375
    %v474 = vpop.f32.mrf.mxu0
    %v475 = vadd.f32 0.0, %v474
    %v476 = vpop.f32.mrf.mxu0
    %v477 = vpop.f32.mrf.mxu0
    %v478 = vadd.f32 0.0, %v477
    %v479 = vpop.f32.mrf.mxu0
    %480 = vdwg.mxu0
    %481 = vst [vmem:[#allocation8 + $0x80] sm:$0xff] %v419
    %482 = vst [vmem:[#allocation8 + $0x88] sm:$0xff] %v422
    %483 = vst [vmem:[#allocation8 + $0x90] sm:$0xff] %v427
    %484 = vst [vmem:[#allocation8 + $0x98] sm:$0xff] %v430
    %485 = vst [vmem:[#allocation8 + $0xa0] sm:$0xff] %v435
    %486 = vst [vmem:[#allocation8 + $0xa8] sm:$0xff] %v438
    %487 = vst [vmem:[#allocation8 + $0xb0] sm:$0xff] %v443
    %488 = vst [vmem:[#allocation8 + $0xb8] sm:$0xff] %v446
    %489 = vst [vmem:[#allocation8 + $0xc0] sm:$0xff] %v451
    %490 = vst [vmem:[#allocation8 + $0xc8] sm:$0xff] %v454
    %491 = vst [vmem:[#allocation8 + $0xd0] sm:$0xff] %v459
    %492 = vst [vmem:[#allocation8 + $0xd8] sm:$0xff] %v462
    %493 = vst [vmem:[#allocation8 + $0xe0] sm:$0xff] %v467
    %494 = vst [vmem:[#allocation8 + $0xe8] sm:$0xff] %v470
    %495 = vst [vmem:[#allocation8 + $0xf0] sm:$0xff] %v475
    %496 = vst [vmem:[#allocation8 + $0xf8] sm:$0xff] %v478
    %v513 = vunpack.c.l.b16 %v63
    %v514 = vunpack.c.l.b16 %v64
    %v515 = vunpack.c.l.b16 %v65
    %v516 = vunpack.c.l.b16 %v66
    %v517 = vunpack.c.l.b16 %v67
    %v518 = vunpack.c.l.b16 %v68
    %v519 = vunpack.c.l.b16 %v69
    %v520 = vunpack.c.l.b16 %v70
    %v521 = vunpack.c.l.b16 %v71
    %v522 = vunpack.c.l.b16 %v72
    %v523 = vunpack.c.l.b16 %v73
    %v524 = vunpack.c.l.b16 %v74
    %v525 = vunpack.c.l.b16 %v75
    %v526 = vunpack.c.l.b16 %v76
    %v527 = vunpack.c.l.b16 %v77
    %v528 = vunpack.c.l.b16 %v78
    %v529 = vpack.c.b16 %v514, %v513
    %v530 = vpack.c.b16 %v516, %v515
    %v531 = vpack.c.b16 %v518, %v517
    %v532 = vpack.c.b16 %v520, %v519
    %v533 = vpack.c.b16 %v522, %v521
    %v534 = vpack.c.b16 %v524, %v523
    %v535 = vpack.c.b16 %v526, %v525
    %v536 = vpack.c.b16 %v528, %v527
    %545 = vmatprep.subr.bf16.mxu0 %v375
    %546 = vmatpush1.bf16.msra.mxu0 %v182
    %547 = vmatprep.subr.bf16.mxu0 %v374
    %548 = vmatpush1.bf16.msra.mxu0 %v181
    %549 = vmatprep.subr.bf16.mxu0 %v373
    %550 = vmatpush1.bf16.msra.mxu0 %v180
    %551 = vmatprep.subr.bf16.mxu0 %v372
    %552 = vmatpush1.bf16.msra.mxu0 %v179
    %553 = vmatprep.subr.bf16.mxu0 %v371
    %554 = vmatpush1.bf16.msra.mxu0 %v178
    %555 = vmatprep.subr.bf16.mxu0 %v370
    %556 = vmatpush1.bf16.msra.mxu0 %v177
    %557 = vmatprep.subr.bf16.mxu0 %v369
    %558 = vmatpush1.bf16.msra.mxu0 %v176
    %559 = vmatprep.subr.bf16.mxu0 %v368
    %560 = vmatpush1.bf16.msra.mxu0 %v175
    %561 = vmatprep.subr.bf16.mxu0 0
    %562 = vmatpush2.bf16.msra.mxu0 0
    %563 = vmatprep.subr.bf16.mxu0 0
    %564 = vmatpush2.bf16.msra.mxu0 0
    %565 = vmatprep.subr.bf16.mxu0 0
    %566 = vmatpush2.bf16.msra.mxu0 0
    %567 = vmatprep.subr.bf16.mxu0 0
    %568 = vmatpush2.bf16.msra.mxu0 0
    %569 = vmatprep.subr.bf16.mxu0 0
    %570 = vmatpush2.bf16.msra.mxu0 0
    %571 = vmatprep.subr.bf16.mxu0 0
    %572 = vmatpush2.bf16.msra.mxu0 0
    %573 = vmatprep.subr.bf16.mxu0 0
    %574 = vmatpush2.bf16.msra.mxu0 0
    %575 = vmatprep.subr.bf16.mxu0 0
    %576 = vmatpush2.bf16.msra.mxu0 0
    %577 = vmatprep.mubr.bf16.mxu0 0
    %578 = vmatmul.mubr.bf16.gmra.mxu0 %v529
    %v579 = vpop.f32.mrf.mxu0
    %v580 = vadd.f32 0.0, %v579
    %v581 = vpop.f32.mrf.mxu0
    %v582 = vadd.f32 0.0, %v581
    %v583 = vpop.f32.mrf.mxu0
    %v584 = vadd.f32 0.0, %v583
    %v585 = vpop.f32.mrf.mxu0
    %v586 = vadd.f32 0.0, %v585
    %587 = vmatprep.mubr.bf16.mxu0 0
    %588 = vmatmul.mubr.bf16.gmra.mxu0 %v530
    %v589 = vpop.f32.mrf.mxu0
    %v590 = vadd.f32 0.0, %v589
    %v591 = vpop.f32.mrf.mxu0
    %v592 = vadd.f32 0.0, %v591
    %v593 = vpop.f32.mrf.mxu0
    %v594 = vadd.f32 0.0, %v593
    %v595 = vpop.f32.mrf.mxu0
    %v596 = vadd.f32 0.0, %v595
    %597 = vmatprep.mubr.bf16.mxu0 0
    %598 = vmatmul.mubr.bf16.gmra.mxu0 %v531
    %v599 = vpop.f32.mrf.mxu0
    %v600 = vadd.f32 0.0, %v599
    %v601 = vpop.f32.mrf.mxu0
    %v602 = vadd.f32 0.0, %v601
    %v603 = vpop.f32.mrf.mxu0
    %v604 = vadd.f32 0.0, %v603
    %v605 = vpop.f32.mrf.mxu0
    %v606 = vadd.f32 0.0, %v605
    %607 = vmatprep.mubr.bf16.mxu0 0
    %608 = vmatmul.mubr.bf16.gmra.mxu0 %v532
    %v609 = vpop.f32.mrf.mxu0
    %v610 = vadd.f32 0.0, %v609
    %v611 = vpop.f32.mrf.mxu0
    %v612 = vadd.f32 0.0, %v611
    %v613 = vpop.f32.mrf.mxu0
    %v614 = vadd.f32 0.0, %v613
    %v615 = vpop.f32.mrf.mxu0
    %v616 = vadd.f32 0.0, %v615
    %617 = vmatprep.mubr.bf16.mxu0 0
    %618 = vmatmul.mubr.bf16.gmra.mxu0 %v533
    %v619 = vpop.f32.mrf.mxu0
    %v620 = vadd.f32 0.0, %v619
    %v621 = vpop.f32.mrf.mxu0
    %v622 = vadd.f32 0.0, %v621
    %v623 = vpop.f32.mrf.mxu0
    %v624 = vadd.f32 0.0, %v623
    %v625 = vpop.f32.mrf.mxu0
    %v626 = vadd.f32 0.0, %v625
    %627 = vmatprep.mubr.bf16.mxu0 0
    %628 = vmatmul.mubr.bf16.gmra.mxu0 %v534
    %v629 = vpop.f32.mrf.mxu0
    %v630 = vadd.f32 0.0, %v629
    %v631 = vpop.f32.mrf.mxu0
    %v632 = vadd.f32 0.0, %v631
    %v633 = vpop.f32.mrf.mxu0
    %v634 = vadd.f32 0.0, %v633
    %v635 = vpop.f32.mrf.mxu0
    %v636 = vadd.f32 0.0, %v635
    %637 = vmatprep.mubr.bf16.mxu0 0
    %638 = vmatmul.mubr.bf16.gmra.mxu0 %v535
    %v639 = vpop.f32.mrf.mxu0
    %v640 = vadd.f32 0.0, %v639
    %v641 = vpop.f32.mrf.mxu0
    %v642 = vadd.f32 0.0, %v641
    %v643 = vpop.f32.mrf.mxu0
    %v644 = vadd.f32 0.0, %v643
    %v645 = vpop.f32.mrf.mxu0
    %v646 = vadd.f32 0.0, %v645
    %647 = vmatprep.mubr.bf16.mxu0 0
    %648 = vmatmul.mubr.bf16.gmra.mxu0 %v536
    %v649 = vpop.f32.mrf.mxu0
    %v650 = vadd.f32 0.0, %v649
    %v651 = vpop.f32.mrf.mxu0
    %v652 = vadd.f32 0.0, %v651
    %v653 = vpop.f32.mrf.mxu0
    %v654 = vadd.f32 0.0, %v653
    %v655 = vpop.f32.mrf.mxu0
    %v656 = vadd.f32 0.0, %v655
    %657 = vdwg.mxu0
    %v658 = vmul.f32 %v580, 0.5
    %v659 = vmul.f32 %v582, 0.5
    %v660 = vmul.f32 %v584, 0.5
    %v661 = vmul.f32 %v586, 0.5
    %v662 = vmul.f32 %v590, 0.5
    %v663 = vmul.f32 %v592, 0.5
    %v664 = vmul.f32 %v594, 0.5
    %v665 = vmul.f32 %v596, 0.5
    %v666 = vmul.f32 %v600, 0.5
    %v667 = vmul.f32 %v602, 0.5
    %v668 = vmul.f32 %v604, 0.5
    %v669 = vmul.f32 %v606, 0.5
    %v670 = vmul.f32 %v610, 0.5
    %v671 = vmul.f32 %v612, 0.5
    %v672 = vmul.f32 %v614, 0.5
    %v673 = vmul.f32 %v616, 0.5
    %v674 = vmul.f32 %v620, 0.5
    %v675 = vmul.f32 %v622, 0.5
    %v676 = vmul.f32 %v624, 0.5
    %v677 = vmul.f32 %v626, 0.5
    %v678 = vmul.f32 %v630, 0.5
    %v679 = vmul.f32 %v632, 0.5
    %v680 = vmul.f32 %v634, 0.5
    %v681 = vmul.f32 %v636, 0.5
    %v682 = vmul.f32 %v640, 0.5
    %v683 = vmul.f32 %v642, 0.5
    %v684 = vmul.f32 %v644, 0.5
    %v685 = vmul.f32 %v646, 0.5
    %v686 = vmul.f32 %v650, 0.5
    %v687 = vmul.f32 %v652, 0.5
    %v688 = vmul.f32 %v654, 0.5
    %v689 = vmul.f32 %v656, 0.5
    %v690 = vpack.c.bf16 %v660, %v658
    %v691 = vpack.c.bf16 %v661, %v659
    %v692 = vpack.c.bf16 %v664, %v662
    %v693 = vpack.c.bf16 %v665, %v663
    %v694 = vpack.c.bf16 %v668, %v666
    %v695 = vpack.c.bf16 %v669, %v667
    %v696 = vpack.c.bf16 %v672, %v670
    %v697 = vpack.c.bf16 %v673, %v671
    %v698 = vpack.c.bf16 %v676, %v674
    %v699 = vpack.c.bf16 %v677, %v675
    %v700 = vpack.c.bf16 %v680, %v678
    %v701 = vpack.c.bf16 %v681, %v679
    %v702 = vpack.c.bf16 %v684, %v682
    %v703 = vpack.c.bf16 %v685, %v683
    %v704 = vpack.c.bf16 %v688, %v686
    %v705 = vpack.c.bf16 %v689, %v687
    %s706 = scalar_lea.vmem [#allocation7], 64
    %v707 = vld [vmem:[%s706] sm:$0xf]
    %v708 = vld [vmem:[%s706 + $0x4] sm:$0xf]
    %v709 = vld [vmem:[%s706 + $0x8] sm:$0xf]
    %v710 = vld [vmem:[%s706 + $0xc] sm:$0xf]
    %v711 = vld [vmem:[%s706 + $0x10] sm:$0xf]
    %v712 = vld [vmem:[%s706 + $0x14] sm:$0xf]
    %v713 = vld [vmem:[%s706 + $0x18] sm:$0xf]
    %v714 = vld [vmem:[%s706 + $0x1c] sm:$0xf]
    %v715 = vld [vmem:[%s706 + $0x20] sm:$0xf]
    %v716 = vld [vmem:[%s706 + $0x24] sm:$0xf]
    %v717 = vld [vmem:[%s706 + $0x28] sm:$0xf]
    %v718 = vld [vmem:[%s706 + $0x2c] sm:$0xf]
    %v719 = vld [vmem:[%s706 + $0x30] sm:$0xf]
    %v720 = vld [vmem:[%s706 + $0x34] sm:$0xf]
    %v721 = vld [vmem:[%s706 + $0x38] sm:$0xf]
    %v722 = vld [vmem:[%s706 + $0x3c] sm:$0xf]
    %v739 = vunpack.c.l.b16 %v707
    %v740 = vunpack.c.l.b16 %v708
    %v741 = vunpack.c.l.b16 %v709
    %v742 = vunpack.c.l.b16 %v710
    %v743 = vunpack.c.l.b16 %v711
    %v744 = vunpack.c.l.b16 %v712
    %v745 = vunpack.c.l.b16 %v713
    %v746 = vunpack.c.l.b16 %v714
    %v747 = vunpack.c.l.b16 %v715
    %v748 = vunpack.c.l.b16 %v716
    %v749 = vunpack.c.l.b16 %v717
    %v750 = vunpack.c.l.b16 %v718
    %v751 = vunpack.c.l.b16 %v719
    %v752 = vunpack.c.l.b16 %v720
    %v753 = vunpack.c.l.b16 %v721
    %v754 = vunpack.c.l.b16 %v722
    %v755 = vpack.c.b16 %v740, %v739
    %v756 = vpack.c.b16 %v742, %v741
    %v757 = vpack.c.b16 %v744, %v743
    %v758 = vpack.c.b16 %v746, %v745
    %v759 = vpack.c.b16 %v748, %v747
    %v760 = vpack.c.b16 %v750, %v749
    %v761 = vpack.c.b16 %v752, %v751
    %v762 = vpack.c.b16 %v754, %v753
    %771 = vmatprep.subr.bf16.mxu0 0
    %772 = vmatpush1.bf16.msra.mxu0 %v762
    %773 = vmatprep.subr.bf16.mxu0 0
    %774 = vmatpush1.bf16.msra.mxu0 %v761
    %775 = vmatprep.subr.bf16.mxu0 0
    %776 = vmatpush1.bf16.msra.mxu0 %v760
    %777 = vmatprep.subr.bf16.mxu0 0
    %778 = vmatpush1.bf16.msra.mxu0 %v759
    %779 = vmatprep.subr.bf16.mxu0 0
    %780 = vmatpush1.bf16.msra.mxu0 %v758
    %781 = vmatprep.subr.bf16.mxu0 0
    %782 = vmatpush1.bf16.msra.mxu0 %v757
    %783 = vmatprep.subr.bf16.mxu0 0
    %784 = vmatpush1.bf16.msra.mxu0 %v756
    %785 = vmatprep.subr.bf16.mxu0 0
    %786 = vmatpush1.bf16.msra.mxu0 %v755
    %787 = vmatprep.subr.bf16.mxu0 0
    %788 = vmatpush2.bf16.msra.mxu0 0
    %789 = vmatprep.subr.bf16.mxu0 0
    %790 = vmatpush2.bf16.msra.mxu0 0
    %791 = vmatprep.subr.bf16.mxu0 0
    %792 = vmatpush2.bf16.msra.mxu0 0
    %793 = vmatprep.subr.bf16.mxu0 0
    %794 = vmatpush2.bf16.msra.mxu0 0
    %795 = vmatprep.subr.bf16.mxu0 0
    %796 = vmatpush2.bf16.msra.mxu0 0
    %797 = vmatprep.subr.bf16.mxu0 0
    %798 = vmatpush2.bf16.msra.mxu0 0
    %799 = vmatprep.subr.bf16.mxu0 0
    %800 = vmatpush2.bf16.msra.mxu0 0
    %801 = vmatprep.subr.bf16.mxu0 0
    %802 = vmatpush2.bf16.msra.mxu0 0
    %803 = vmatprep.mubr.bf16.mxu0 0
    %804 = vmatmul.mubr.bf16.gmra.mxu0 %v690
    %v805 = vpop.f32.mrf.mxu0
    %v806 = vadd.f32 0.0, %v805
    %v807 = vpop.f32.mrf.mxu0
    %v808 = vpop.f32.mrf.mxu0
    %v809 = vadd.f32 0.0, %v808
    %v810 = vpop.f32.mrf.mxu0
    %811 = vmatprep.mubr.bf16.mxu0 0
    %812 = vmatmul.mubr.bf16.gmra.mxu0 %v692
    %v813 = vpop.f32.mrf.mxu0
    %v814 = vadd.f32 0.0, %v813
    %v815 = vpop.f32.mrf.mxu0
    %v816 = vpop.f32.mrf.mxu0
    %v817 = vadd.f32 0.0, %v816
    %v818 = vpop.f32.mrf.mxu0
    %819 = vmatprep.mubr.bf16.mxu0 0
    %820 = vmatmul.mubr.bf16.gmra.mxu0 %v694
    %v821 = vpop.f32.mrf.mxu0
    %v822 = vadd.f32 0.0, %v821
    %v823 = vpop.f32.mrf.mxu0
    %v824 = vpop.f32.mrf.mxu0
    %v825 = vadd.f32 0.0, %v824
    %v826 = vpop.f32.mrf.mxu0
    %827 = vmatprep.mubr.bf16.mxu0 0
    %828 = vmatmul.mubr.bf16.gmra.mxu0 %v696
    %v829 = vpop.f32.mrf.mxu0
    %v830 = vadd.f32 0.0, %v829
    %v831 = vpop.f32.mrf.mxu0
    %v832 = vpop.f32.mrf.mxu0
    %v833 = vadd.f32 0.0, %v832
    %v834 = vpop.f32.mrf.mxu0
    %835 = vmatprep.mubr.bf16.mxu0 0
    %836 = vmatmul.mubr.bf16.gmra.mxu0 %v698
    %v837 = vpop.f32.mrf.mxu0
    %v838 = vadd.f32 0.0, %v837
    %v839 = vpop.f32.mrf.mxu0
    %v840 = vpop.f32.mrf.mxu0
    %v841 = vadd.f32 0.0, %v840
    %v842 = vpop.f32.mrf.mxu0
    %843 = vmatprep.mubr.bf16.mxu0 0
    %844 = vmatmul.mubr.bf16.gmra.mxu0 %v700
    %v845 = vpop.f32.mrf.mxu0
    %v846 = vadd.f32 0.0, %v845
    %v847 = vpop.f32.mrf.mxu0
    %v848 = vpop.f32.mrf.mxu0
    %v849 = vadd.f32 0.0, %v848
    %v850 = vpop.f32.mrf.mxu0
    %851 = vmatprep.mubr.bf16.mxu0 0
    %852 = vmatmul.mubr.bf16.gmra.mxu0 %v702
    %v853 = vpop.f32.mrf.mxu0
    %v854 = vadd.f32 0.0, %v853
    %v855 = vpop.f32.mrf.mxu0
    %v856 = vpop.f32.mrf.mxu0
    %v857 = vadd.f32 0.0, %v856
    %v858 = vpop.f32.mrf.mxu0
    %859 = vmatprep.mubr.bf16.mxu0 0
    %860 = vmatmul.mubr.bf16.gmra.mxu0 %v704
    %v861 = vpop.f32.mrf.mxu0
    %v862 = vadd.f32 0.0, %v861
    %v863 = vpop.f32.mrf.mxu0
    %v864 = vpop.f32.mrf.mxu0
    %v865 = vadd.f32 0.0, %v864
    %v866 = vpop.f32.mrf.mxu0
    %867 = vdwg.mxu0
    %v868 = vld [vmem:[#allocation8] sm:$0xff]
    %v869 = vld [vmem:[#allocation8 + $0x8] sm:$0xff]
    %v870 = vld [vmem:[#allocation8 + $0x10] sm:$0xff]
    %v871 = vld [vmem:[#allocation8 + $0x18] sm:$0xff]
    %v872 = vld [vmem:[#allocation8 + $0x20] sm:$0xff]
    %v873 = vld [vmem:[#allocation8 + $0x28] sm:$0xff]
    %v874 = vld [vmem:[#allocation8 + $0x30] sm:$0xff]
    %v875 = vld [vmem:[#allocation8 + $0x38] sm:$0xff]
    %v876 = vld [vmem:[#allocation8 + $0x40] sm:$0xff]
    %v877 = vld [vmem:[#allocation8 + $0x48] sm:$0xff]
    %v878 = vld [vmem:[#allocation8 + $0x50] sm:$0xff]
    %v879 = vld [vmem:[#allocation8 + $0x58] sm:$0xff]
    %v880 = vld [vmem:[#allocation8 + $0x60] sm:$0xff]
    %v881 = vld [vmem:[#allocation8 + $0x68] sm:$0xff]
    %v882 = vld [vmem:[#allocation8 + $0x70] sm:$0xff]
    %v883 = vld [vmem:[#allocation8 + $0x78] sm:$0xff]
    %v884 = vadd.f32 %v868, %v806
    %v885 = vadd.f32 %v869, %v809
    %v886 = vadd.f32 %v870, %v814
    %v887 = vadd.f32 %v871, %v817
    %v888 = vadd.f32 %v872, %v822
    %v889 = vadd.f32 %v873, %v825
    %v890 = vadd.f32 %v874, %v830
    %v891 = vadd.f32 %v875, %v833
    %v892 = vadd.f32 %v876, %v838
    %v893 = vadd.f32 %v877, %v841
    %v894 = vadd.f32 %v878, %v846
    %v895 = vadd.f32 %v879, %v849
    %v896 = vadd.f32 %v880, %v854
    %v897 = vadd.f32 %v881, %v857
    %v898 = vadd.f32 %v882, %v862
    %v899 = vadd.f32 %v883, %v865
    %900 = vst [vmem:[#allocation8] sm:$0xff] %v884
    %901 = vst [vmem:[#allocation8 + $0x8] sm:$0xff] %v885
    %902 = vst [vmem:[#allocation8 + $0x10] sm:$0xff] %v886
    %903 = vst [vmem:[#allocation8 + $0x18] sm:$0xff] %v887
    %904 = vst [vmem:[#allocation8 + $0x20] sm:$0xff] %v888
    %905 = vst [vmem:[#allocation8 + $0x28] sm:$0xff] %v889
    %906 = vst [vmem:[#allocation8 + $0x30] sm:$0xff] %v890
    %907 = vst [vmem:[#allocation8 + $0x38] sm:$0xff] %v891
    %908 = vst [vmem:[#allocation8 + $0x40] sm:$0xff] %v892
    %909 = vst [vmem:[#allocation8 + $0x48] sm:$0xff] %v893
    %910 = vst [vmem:[#allocation8 + $0x50] sm:$0xff] %v894
    %911 = vst [vmem:[#allocation8 + $0x58] sm:$0xff] %v895
    %912 = vst [vmem:[#allocation8 + $0x60] sm:$0xff] %v896
    %913 = vst [vmem:[#allocation8 + $0x68] sm:$0xff] %v897
    %914 = vst [vmem:[#allocation8 + $0x70] sm:$0xff] %v898
    %915 = vst [vmem:[#allocation8 + $0x78] sm:$0xff] %v899
    %916 = vmatprep.subr.bf16.mxu0 0
    %917 = vmatpush1.bf16.msra.mxu0 %v762
    %918 = vmatprep.subr.bf16.mxu0 0
    %919 = vmatpush1.bf16.msra.mxu0 %v761
    %920 = vmatprep.subr.bf16.mxu0 0
    %921 = vmatpush1.bf16.msra.mxu0 %v760
    %922 = vmatprep.subr.bf16.mxu0 0
    %923 = vmatpush1.bf16.msra.mxu0 %v759
    %924 = vmatprep.subr.bf16.mxu0 0
    %925 = vmatpush1.bf16.msra.mxu0 %v758
    %926 = vmatprep.subr.bf16.mxu0 0
    %927 = vmatpush1.bf16.msra.mxu0 %v757
    %928 = vmatprep.subr.bf16.mxu0 0
    %929 = vmatpush1.bf16.msra.mxu0 %v756
    %930 = vmatprep.subr.bf16.mxu0 0
    %931 = vmatpush1.bf16.msra.mxu0 %v755
    %932 = vmatprep.subr.bf16.mxu0 0
    %933 = vmatpush2.bf16.msra.mxu0 0
    %934 = vmatprep.subr.bf16.mxu0 0
    %935 = vmatpush2.bf16.msra.mxu0 0
    %936 = vmatprep.subr.bf16.mxu0 0
    %937 = vmatpush2.bf16.msra.mxu0 0
    %938 = vmatprep.subr.bf16.mxu0 0
    %939 = vmatpush2.bf16.msra.mxu0 0
    %940 = vmatprep.subr.bf16.mxu0 0
    %941 = vmatpush2.bf16.msra.mxu0 0
    %942 = vmatprep.subr.bf16.mxu0 0
    %943 = vmatpush2.bf16.msra.mxu0 0
    %944 = vmatprep.subr.bf16.mxu0 0
    %945 = vmatpush2.bf16.msra.mxu0 0
    %946 = vmatprep.subr.bf16.mxu0 0
    %947 = vmatpush2.bf16.msra.mxu0 0
    %948 = vmatprep.mubr.bf16.mxu0 0
    %949 = vmatmul.mubr.bf16.gmra.mxu0 %v691
    %v950 = vpop.f32.mrf.mxu0
    %v951 = vadd.f32 0.0, %v950
    %v952 = vpop.f32.mrf.mxu0
    %v953 = vpop.f32.mrf.mxu0
    %v954 = vadd.f32 0.0, %v953
    %v955 = vpop.f32.mrf.mxu0
    %956 = vmatprep.mubr.bf16.mxu0 0
    %957 = vmatmul.mubr.bf16.gmra.mxu0 %v693
    %v958 = vpop.f32.mrf.mxu0
    %v959 = vadd.f32 0.0, %v958
    %v960 = vpop.f32.mrf.mxu0
    %v961 = vpop.f32.mrf.mxu0
    %v962 = vadd.f32 0.0, %v961
    %v963 = vpop.f32.mrf.mxu0
    %964 = vmatprep.mubr.bf16.mxu0 0
    %965 = vmatmul.mubr.bf16.gmra.mxu0 %v695
    %v966 = vpop.f32.mrf.mxu0
    %v967 = vadd.f32 0.0, %v966
    %v968 = vpop.f32.mrf.mxu0
    %v969 = vpop.f32.mrf.mxu0
    %v970 = vadd.f32 0.0, %v969
    %v971 = vpop.f32.mrf.mxu0
    %972 = vmatprep.mubr.bf16.mxu0 0
    %973 = vmatmul.mubr.bf16.gmra.mxu0 %v697
    %v974 = vpop.f32.mrf.mxu0
    %v975 = vadd.f32 0.0, %v974
    %v976 = vpop.f32.mrf.mxu0
    %v977 = vpop.f32.mrf.mxu0
    %v978 = vadd.f32 0.0, %v977
    %v979 = vpop.f32.mrf.mxu0
    %980 = vmatprep.mubr.bf16.mxu0 0
    %981 = vmatmul.mubr.bf16.gmra.mxu0 %v699
    %v982 = vpop.f32.mrf.mxu0
    %v983 = vadd.f32 0.0, %v982
    %v984 = vpop.f32.mrf.mxu0
    %v985 = vpop.f32.mrf.mxu0
    %v986 = vadd.f32 0.0, %v985
    %v987 = vpop.f32.mrf.mxu0
    %988 = vmatprep.mubr.bf16.mxu0 0
    %989 = vmatmul.mubr.bf16.gmra.mxu0 %v701
    %v990 = vpop.f32.mrf.mxu0
    %v991 = vadd.f32 0.0, %v990
    %v992 = vpop.f32.mrf.mxu0
    %v993 = vpop.f32.mrf.mxu0
    %v994 = vadd.f32 0.0, %v993
    %v995 = vpop.f32.mrf.mxu0
    %996 = vmatprep.mubr.bf16.mxu0 0
    %997 = vmatmul.mubr.bf16.gmra.mxu0 %v703
    %v998 = vpop.f32.mrf.mxu0
    %v999 = vadd.f32 0.0, %v998
    %v1000 = vpop.f32.mrf.mxu0
    %v1001 = vpop.f32.mrf.mxu0
    %v1002 = vadd.f32 0.0, %v1001
    %v1003 = vpop.f32.mrf.mxu0
    %1004 = vmatprep.mubr.bf16.mxu0 0
    %1005 = vmatmul.mubr.bf16.gmra.mxu0 %v705
    %v1006 = vpop.f32.mrf.mxu0
    %v1007 = vadd.f32 0.0, %v1006
    %v1008 = vpop.f32.mrf.mxu0
    %v1009 = vpop.f32.mrf.mxu0
    %v1010 = vadd.f32 0.0, %v1009
    %v1011 = vpop.f32.mrf.mxu0
    %1012 = vdwg.mxu0
    %v1013 = vld [vmem:[#allocation8 + $0x80] sm:$0xff]
    %v1014 = vld [vmem:[#allocation8 + $0x88] sm:$0xff]
    %v1015 = vld [vmem:[#allocation8 + $0x90] sm:$0xff]
    %v1016 = vld [vmem:[#allocation8 + $0x98] sm:$0xff]
    %v1017 = vld [vmem:[#allocation8 + $0xa0] sm:$0xff]
    %v1018 = vld [vmem:[#allocation8 + $0xa8] sm:$0xff]
    %v1019 = vld [vmem:[#allocation8 + $0xb0] sm:$0xff]
    %v1020 = vld [vmem:[#allocation8 + $0xb8] sm:$0xff]
    %v1021 = vld [vmem:[#allocation8 + $0xc0] sm:$0xff]
    %v1022 = vld [vmem:[#allocation8 + $0xc8] sm:$0xff]
    %v1023 = vld [vmem:[#allocation8 + $0xd0] sm:$0xff]
    %v1024 = vld [vmem:[#allocation8 + $0xd8] sm:$0xff]
    %v1025 = vld [vmem:[#allocation8 + $0xe0] sm:$0xff]
    %v1026 = vld [vmem:[#allocation8 + $0xe8] sm:$0xff]
    %v1027 = vld [vmem:[#allocation8 + $0xf0] sm:$0xff]
    %v1028 = vld [vmem:[#allocation8 + $0xf8] sm:$0xff]
    %v1029 = vadd.f32 %v1013, %v951
    %v1030 = vadd.f32 %v1014, %v954
    %v1031 = vadd.f32 %v1015, %v959
    %v1032 = vadd.f32 %v1016, %v962
    %v1033 = vadd.f32 %v1017, %v967
    %v1034 = vadd.f32 %v1018, %v970
    %v1035 = vadd.f32 %v1019, %v975
    %v1036 = vadd.f32 %v1020, %v978
    %v1037 = vadd.f32 %v1021, %v983
    %v1038 = vadd.f32 %v1022, %v986
    %v1039 = vadd.f32 %v1023, %v991
    %v1040 = vadd.f32 %v1024, %v994
    %v1041 = vadd.f32 %v1025, %v999
    %v1042 = vadd.f32 %v1026, %v1002
    %v1043 = vadd.f32 %v1027, %v1007
    %v1044 = vadd.f32 %v1028, %v1010
    %1045 = vst [vmem:[#allocation8 + $0x80] sm:$0xff] %v1029
    %1046 = vst [vmem:[#allocation8 + $0x88] sm:$0xff] %v1030
    %1047 = vst [vmem:[#allocation8 + $0x90] sm:$0xff] %v1031
    %1048 = vst [vmem:[#allocation8 + $0x98] sm:$0xff] %v1032
    %1049 = vst [vmem:[#allocation8 + $0xa0] sm:$0xff] %v1033
    %1050 = vst [vmem:[#allocation8 + $0xa8] sm:$0xff] %v1034
    %1051 = vst [vmem:[#allocation8 + $0xb0] sm:$0xff] %v1035
    %1052 = vst [vmem:[#allocation8 + $0xb8] sm:$0xff] %v1036
    %1053 = vst [vmem:[#allocation8 + $0xc0] sm:$0xff] %v1037
    %1054 = vst [vmem:[#allocation8 + $0xc8] sm:$0xff] %v1038
    %1055 = vst [vmem:[#allocation8 + $0xd0] sm:$0xff] %v1039
    %1056 = vst [vmem:[#allocation8 + $0xd8] sm:$0xff] %v1040
    %1057 = vst [vmem:[#allocation8 + $0xe0] sm:$0xff] %v1041
    %1058 = vst [vmem:[#allocation8 + $0xe8] sm:$0xff] %v1042
    %1059 = vst [vmem:[#allocation8 + $0xf0] sm:$0xff] %v1043
    %1060 = vst [vmem:[#allocation8 + $0xf8] sm:$0xff] %v1044
    %1061 = vmatprep.subr.bf16.mxu0 %v705
    %1062 = vmatpush1.bf16.msra.mxu0 %v704
    %1063 = vmatprep.subr.bf16.mxu0 %v703
    %1064 = vmatpush1.bf16.msra.mxu0 %v702
    %1065 = vmatprep.subr.bf16.mxu0 %v701
    %1066 = vmatpush1.bf16.msra.mxu0 %v700
    %1067 = vmatprep.subr.bf16.mxu0 %v699
    %1068 = vmatpush1.bf16.msra.mxu0 %v698
    %1069 = vmatprep.subr.bf16.mxu0 %v697
    %1070 = vmatpush1.bf16.msra.mxu0 %v696
    %1071 = vmatprep.subr.bf16.mxu0 %v695
    %1072 = vmatpush1.bf16.msra.mxu0 %v694
    %1073 = vmatprep.subr.bf16.mxu0 %v693
    %1074 = vmatpush1.bf16.msra.mxu0 %v692
    %1075 = vmatprep.subr.bf16.mxu0 %v691
    %1076 = vmatpush1.bf16.msra.mxu0 %v690
    %1077 = vmatprep.subr.bf16.mxu0 0
    %1078 = vmatpush2.bf16.msra.mxu0 0
    %1079 = vmatprep.subr.bf16.mxu0 0
    %1080 = vmatpush2.bf16.msra.mxu0 0
    %1081 = vmatprep.subr.bf16.mxu0 0
    %1082 = vmatpush2.bf16.msra.mxu0 0
    %1083 = vmatprep.subr.bf16.mxu0 0
    %1084 = vmatpush2.bf16.msra.mxu0 0
    %1085 = vmatprep.subr.bf16.mxu0 0
    %1086 = vmatpush2.bf16.msra.mxu0 0
    %1087 = vmatprep.subr.bf16.mxu0 0
    %1088 = vmatpush2.bf16.msra.mxu0 0
    %1089 = vmatprep.subr.bf16.mxu0 0
    %1090 = vmatpush2.bf16.msra.mxu0 0
    %1091 = vmatprep.subr.bf16.mxu0 0
    %1092 = vmatpush2.bf16.msra.mxu0 0
    %1093 = vmatprep.mubr.bf16.mxu0 0
    %1094 = vmatmul.mubr.bf16.gmra.mxu0 %v529
    %v1095 = vpop.f32.mrf.mxu0
    %v1096 = vadd.f32 0.0, %v1095
    %v1097 = vpop.f32.mrf.mxu0
    %v1098 = vadd.f32 0.0, %v1097
    %v1099 = vpop.f32.mrf.mxu0
    %v1100 = vadd.f32 0.0, %v1099
    %v1101 = vpop.f32.mrf.mxu0
    %v1102 = vadd.f32 0.0, %v1101
    %1103 = vmatprep.mubr.bf16.mxu0 0
    %1104 = vmatmul.mubr.bf16.gmra.mxu0 %v530
    %v1105 = vpop.f32.mrf.mxu0
    %v1106 = vadd.f32 0.0, %v1105
    %v1107 = vpop.f32.mrf.mxu0
    %v1108 = vadd.f32 0.0, %v1107
    %v1109 = vpop.f32.mrf.mxu0
    %v1110 = vadd.f32 0.0, %v1109
    %v1111 = vpop.f32.mrf.mxu0
    %v1112 = vadd.f32 0.0, %v1111
    %1113 = vmatprep.mubr.bf16.mxu0 0
    %1114 = vmatmul.mubr.bf16.gmra.mxu0 %v531
    %v1115 = vpop.f32.mrf.mxu0
    %v1116 = vadd.f32 0.0, %v1115
    %v1117 = vpop.f32.mrf.mxu0
    %v1118 = vadd.f32 0.0, %v1117
    %v1119 = vpop.f32.mrf.mxu0
    %v1120 = vadd.f32 0.0, %v1119
    %v1121 = vpop.f32.mrf.mxu0
    %v1122 = vadd.f32 0.0, %v1121
    %1123 = vmatprep.mubr.bf16.mxu0 0
    %1124 = vmatmul.mubr.bf16.gmra.mxu0 %v532
    %v1125 = vpop.f32.mrf.mxu0
    %v1126 = vadd.f32 0.0, %v1125
    %v1127 = vpop.f32.mrf.mxu0
    %v1128 = vadd.f32 0.0, %v1127
    %v1129 = vpop.f32.mrf.mxu0
    %v1130 = vadd.f32 0.0, %v1129
    %v1131 = vpop.f32.mrf.mxu0
    %v1132 = vadd.f32 0.0, %v1131
    %1133 = vmatprep.mubr.bf16.mxu0 0
    %1134 = vmatmul.mubr.bf16.gmra.mxu0 %v533
    %v1135 = vpop.f32.mrf.mxu0
    %v1136 = vadd.f32 0.0, %v1135
    %v1137 = vpop.f32.mrf.mxu0
    %v1138 = vadd.f32 0.0, %v1137
    %v1139 = vpop.f32.mrf.mxu0
    %v1140 = vadd.f32 0.0, %v1139
    %v1141 = vpop.f32.mrf.mxu0
    %v1142 = vadd.f32 0.0, %v1141
    %1143 = vmatprep.mubr.bf16.mxu0 0
    %1144 = vmatmul.mubr.bf16.gmra.mxu0 %v534
    %v1145 = vpop.f32.mrf.mxu0
    %v1146 = vadd.f32 0.0, %v1145
    %v1147 = vpop.f32.mrf.mxu0
    %v1148 = vadd.f32 0.0, %v1147
    %v1149 = vpop.f32.mrf.mxu0
    %v1150 = vadd.f32 0.0, %v1149
    %v1151 = vpop.f32.mrf.mxu0
    %v1152 = vadd.f32 0.0, %v1151
    %1153 = vmatprep.mubr.bf16.mxu0 0
    %1154 = vmatmul.mubr.bf16.gmra.mxu0 %v535
    %v1155 = vpop.f32.mrf.mxu0
    %v1156 = vadd.f32 0.0, %v1155
    %v1157 = vpop.f32.mrf.mxu0
    %v1158 = vadd.f32 0.0, %v1157
    %v1159 = vpop.f32.mrf.mxu0
    %v1160 = vadd.f32 0.0, %v1159
    %v1161 = vpop.f32.mrf.mxu0
    %v1162 = vadd.f32 0.0, %v1161
    %1163 = vmatprep.mubr.bf16.mxu0 0
    %1164 = vmatmul.mubr.bf16.gmra.mxu0 %v536
    %v1165 = vpop.f32.mrf.mxu0
    %v1166 = vadd.f32 0.0, %v1165
    %v1167 = vpop.f32.mrf.mxu0
    %v1168 = vadd.f32 0.0, %v1167
    %v1169 = vpop.f32.mrf.mxu0
    %v1170 = vadd.f32 0.0, %v1169
    %v1171 = vpop.f32.mrf.mxu0
    %v1172 = vadd.f32 0.0, %v1171
    %1173 = vdwg.mxu0
    %v1174 = vsub.f32 %v1096, %v95
    %v1175 = vsub.f32 %v1098, %v96
    %v1176 = vsub.f32 %v1100, %v97
    %v1177 = vsub.f32 %v1102, %v98
    %v1178 = vsub.f32 %v1106, %v99
    %v1179 = vsub.f32 %v1108, %v100
    %v1180 = vsub.f32 %v1110, %v101
    %v1181 = vsub.f32 %v1112, %v102
    %v1182 = vsub.f32 %v1116, %v103
    %v1183 = vsub.f32 %v1118, %v104
    %v1184 = vsub.f32 %v1120, %v105
    %v1185 = vsub.f32 %v1122, %v106
    %v1186 = vsub.f32 %v1126, %v107
    %v1187 = vsub.f32 %v1128, %v108
    %v1188 = vsub.f32 %v1130, %v109
    %v1189 = vsub.f32 %v1132, %v110
    %v1190 = vsub.f32 %v1136, %v111
    %v1191 = vsub.f32 %v1138, %v112
    %v1192 = vsub.f32 %v1140, %v113
    %v1193 = vsub.f32 %v1142, %v114
    %v1194 = vsub.f32 %v1146, %v115
    %v1195 = vsub.f32 %v1148, %v116
    %v1196 = vsub.f32 %v1150, %v117
    %v1197 = vsub.f32 %v1152, %v118
    %v1198 = vsub.f32 %v1156, %v119
    %v1199 = vsub.f32 %v1158, %v120
    %v1200 = vsub.f32 %v1160, %v121
    %v1201 = vsub.f32 %v1162, %v122
    %v1202 = vsub.f32 %v1166, %v123
    %v1203 = vsub.f32 %v1168, %v124
    %v1204 = vsub.f32 %v1170, %v125
    %v1205 = vsub.f32 %v1172, %v126
    %v1206 = vpack.c.bf16 %v1176, %v1174
    %v1207 = vpack.c.bf16 %v1177, %v1175
    %v1208 = vpack.c.bf16 %v1180, %v1178
    %v1209 = vpack.c.bf16 %v1181, %v1179
    %v1210 = vpack.c.bf16 %v1184, %v1182
    %v1211 = vpack.c.bf16 %v1185, %v1183
    %v1212 = vpack.c.bf16 %v1188, %v1186
    %v1213 = vpack.c.bf16 %v1189, %v1187
    %v1214 = vpack.c.bf16 %v1192, %v1190
    %v1215 = vpack.c.bf16 %v1193, %v1191
    %v1216 = vpack.c.bf16 %v1196, %v1194
    %v1217 = vpack.c.bf16 %v1197, %v1195
    %v1218 = vpack.c.bf16 %v1200, %v1198
    %v1219 = vpack.c.bf16 %v1201, %v1199
    %v1220 = vpack.c.bf16 %v1204, %v1202
    %v1221 = vpack.c.bf16 %v1205, %v1203
    %s1222 = scalar_lea.vmem [#allocation7], 128
    %v1223 = vld [vmem:[%s1222] sm:$0xf]
    %v1224 = vld [vmem:[%s1222 + $0x4] sm:$0xf]
    %v1225 = vld [vmem:[%s1222 + $0x8] sm:$0xf]
    %v1226 = vld [vmem:[%s1222 + $0xc] sm:$0xf]
    %v1227 = vld [vmem:[%s1222 + $0x10] sm:$0xf]
    %v1228 = vld [vmem:[%s1222 + $0x14] sm:$0xf]
    %v1229 = vld [vmem:[%s1222 + $0x18] sm:$0xf]
    %v1230 = vld [vmem:[%s1222 + $0x1c] sm:$0xf]
    %v1231 = vld [vmem:[%s1222 + $0x20] sm:$0xf]
    %v1232 = vld [vmem:[%s1222 + $0x24] sm:$0xf]
    %v1233 = vld [vmem:[%s1222 + $0x28] sm:$0xf]
    %v1234 = vld [vmem:[%s1222 + $0x2c] sm:$0xf]
    %v1235 = vld [vmem:[%s1222 + $0x30] sm:$0xf]
    %v1236 = vld [vmem:[%s1222 + $0x34] sm:$0xf]
    %v1237 = vld [vmem:[%s1222 + $0x38] sm:$0xf]
    %v1238 = vld [vmem:[%s1222 + $0x3c] sm:$0xf]
    %v1255 = vunpack.c.l.b16 %v1223
    %v1256 = vunpack.c.l.b16 %v1224
    %v1257 = vunpack.c.l.b16 %v1225
    %v1258 = vunpack.c.l.b16 %v1226
    %v1259 = vunpack.c.l.b16 %v1227
    %v1260 = vunpack.c.l.b16 %v1228
    %v1261 = vunpack.c.l.b16 %v1229
    %v1262 = vunpack.c.l.b16 %v1230
    %v1263 = vunpack.c.l.b16 %v1231
    %v1264 = vunpack.c.l.b16 %v1232
    %v1265 = vunpack.c.l.b16 %v1233
    %v1266 = vunpack.c.l.b16 %v1234
    %v1267 = vunpack.c.l.b16 %v1235
    %v1268 = vunpack.c.l.b16 %v1236
    %v1269 = vunpack.c.l.b16 %v1237
    %v1270 = vunpack.c.l.b16 %v1238
    %v1271 = vpack.c.b16 %v1256, %v1255
    %v1272 = vpack.c.b16 %v1258, %v1257
    %v1273 = vpack.c.b16 %v1260, %v1259
    %v1274 = vpack.c.b16 %v1262, %v1261
    %v1275 = vpack.c.b16 %v1264, %v1263
    %v1276 = vpack.c.b16 %v1266, %v1265
    %v1277 = vpack.c.b16 %v1268, %v1267
    %v1278 = vpack.c.b16 %v1270, %v1269
    %1287 = vmatprep.subr.bf16.mxu0 0
    %1288 = vmatpush1.bf16.msra.mxu0 %v1278
    %1289 = vmatprep.subr.bf16.mxu0 0
    %1290 = vmatpush1.bf16.msra.mxu0 %v1277
    %1291 = vmatprep.subr.bf16.mxu0 0
    %1292 = vmatpush1.bf16.msra.mxu0 %v1276
    %1293 = vmatprep.subr.bf16.mxu0 0
    %1294 = vmatpush1.bf16.msra.mxu0 %v1275
    %1295 = vmatprep.subr.bf16.mxu0 0
    %1296 = vmatpush1.bf16.msra.mxu0 %v1274
    %1297 = vmatprep.subr.bf16.mxu0 0
    %1298 = vmatpush1.bf16.msra.mxu0 %v1273
    %1299 = vmatprep.subr.bf16.mxu0 0
    %1300 = vmatpush1.bf16.msra.mxu0 %v1272
    %1301 = vmatprep.subr.bf16.mxu0 0
    %1302 = vmatpush1.bf16.msra.mxu0 %v1271
    %1303 = vmatprep.subr.bf16.mxu0 0
    %1304 = vmatpush2.bf16.msra.mxu0 0
    %1305 = vmatprep.subr.bf16.mxu0 0
    %1306 = vmatpush2.bf16.msra.mxu0 0
    %1307 = vmatprep.subr.bf16.mxu0 0
    %1308 = vmatpush2.bf16.msra.mxu0 0
    %1309 = vmatprep.subr.bf16.mxu0 0
    %1310 = vmatpush2.bf16.msra.mxu0 0
    %1311 = vmatprep.subr.bf16.mxu0 0
    %1312 = vmatpush2.bf16.msra.mxu0 0
    %1313 = vmatprep.subr.bf16.mxu0 0
    %1314 = vmatpush2.bf16.msra.mxu0 0
    %1315 = vmatprep.subr.bf16.mxu0 0
    %1316 = vmatpush2.bf16.msra.mxu0 0
    %1317 = vmatprep.subr.bf16.mxu0 0
    %1318 = vmatpush2.bf16.msra.mxu0 0
    %1319 = vmatprep.mubr.bf16.mxu0 0
    %1320 = vmatmul.mubr.bf16.gmra.mxu0 %v1206
    %v1321 = vpop.f32.mrf.mxu0
    %v1322 = vadd.f32 0.0, %v1321
    %v1323 = vpop.f32.mrf.mxu0
    %v1324 = vpop.f32.mrf.mxu0
    %v1325 = vadd.f32 0.0, %v1324
    %v1326 = vpop.f32.mrf.mxu0
    %1327 = vmatprep.mubr.bf16.mxu0 0
    %1328 = vmatmul.mubr.bf16.gmra.mxu0 %v1208
    %v1329 = vpop.f32.mrf.mxu0
    %v1330 = vadd.f32 0.0, %v1329
    %v1331 = vpop.f32.mrf.mxu0
    %v1332 = vpop.f32.mrf.mxu0
    %v1333 = vadd.f32 0.0, %v1332
    %v1334 = vpop.f32.mrf.mxu0
    %1335 = vmatprep.mubr.bf16.mxu0 0
    %1336 = vmatmul.mubr.bf16.gmra.mxu0 %v1210
    %v1337 = vpop.f32.mrf.mxu0
    %v1338 = vadd.f32 0.0, %v1337
    %v1339 = vpop.f32.mrf.mxu0
    %v1340 = vpop.f32.mrf.mxu0
    %v1341 = vadd.f32 0.0, %v1340
    %v1342 = vpop.f32.mrf.mxu0
    %1343 = vmatprep.mubr.bf16.mxu0 0
    %1344 = vmatmul.mubr.bf16.gmra.mxu0 %v1212
    %v1345 = vpop.f32.mrf.mxu0
    %v1346 = vadd.f32 0.0, %v1345
    %v1347 = vpop.f32.mrf.mxu0
    %v1348 = vpop.f32.mrf.mxu0
    %v1349 = vadd.f32 0.0, %v1348
    %v1350 = vpop.f32.mrf.mxu0
    %1351 = vmatprep.mubr.bf16.mxu0 0
    %1352 = vmatmul.mubr.bf16.gmra.mxu0 %v1214
    %v1353 = vpop.f32.mrf.mxu0
    %v1354 = vadd.f32 0.0, %v1353
    %v1355 = vpop.f32.mrf.mxu0
    %v1356 = vpop.f32.mrf.mxu0
    %v1357 = vadd.f32 0.0, %v1356
    %v1358 = vpop.f32.mrf.mxu0
    %1359 = vmatprep.mubr.bf16.mxu0 0
    %1360 = vmatmul.mubr.bf16.gmra.mxu0 %v1216
    %v1361 = vpop.f32.mrf.mxu0
    %v1362 = vadd.f32 0.0, %v1361
    %v1363 = vpop.f32.mrf.mxu0
    %v1364 = vpop.f32.mrf.mxu0
    %v1365 = vadd.f32 0.0, %v1364
    %v1366 = vpop.f32.mrf.mxu0
    %1367 = vmatprep.mubr.bf16.mxu0 0
    %1368 = vmatmul.mubr.bf16.gmra.mxu0 %v1218
    %v1369 = vpop.f32.mrf.mxu0
    %v1370 = vadd.f32 0.0, %v1369
    %v1371 = vpop.f32.mrf.mxu0
    %v1372 = vpop.f32.mrf.mxu0
    %v1373 = vadd.f32 0.0, %v1372
    %v1374 = vpop.f32.mrf.mxu0
    %1375 = vmatprep.mubr.bf16.mxu0 0
    %1376 = vmatmul.mubr.bf16.gmra.mxu0 %v1220
    %v1377 = vpop.f32.mrf.mxu0
    %v1378 = vadd.f32 0.0, %v1377
    %v1379 = vpop.f32.mrf.mxu0
    %v1380 = vpop.f32.mrf.mxu0
    %v1381 = vadd.f32 0.0, %v1380
    %v1382 = vpop.f32.mrf.mxu0
    %1383 = vdwg.mxu0
    %v1384 = vld [vmem:[#allocation8] sm:$0xff]
    %v1385 = vld [vmem:[#allocation8 + $0x8] sm:$0xff]
    %v1386 = vld [vmem:[#allocation8 + $0x10] sm:$0xff]
    %v1387 = vld [vmem:[#allocation8 + $0x18] sm:$0xff]
    %v1388 = vld [vmem:[#allocation8 + $0x20] sm:$0xff]
    %v1389 = vld [vmem:[#allocation8 + $0x28] sm:$0xff]
    %v1390 = vld [vmem:[#allocation8 + $0x30] sm:$0xff]
    %v1391 = vld [vmem:[#allocation8 + $0x38] sm:$0xff]
    %v1392 = vld [vmem:[#allocation8 + $0x40] sm:$0xff]
    %v1393 = vld [vmem:[#allocation8 + $0x48] sm:$0xff]
    %v1394 = vld [vmem:[#allocation8 + $0x50] sm:$0xff]
    %v1395 = vld [vmem:[#allocation8 + $0x58] sm:$0xff]
    %v1396 = vld [vmem:[#allocation8 + $0x60] sm:$0xff]
    %v1397 = vld [vmem:[#allocation8 + $0x68] sm:$0xff]
    %v1398 = vld [vmem:[#allocation8 + $0x70] sm:$0xff]
    %v1399 = vld [vmem:[#allocation8 + $0x78] sm:$0xff]
    %v1400 = vadd.f32 %v1384, %v1322
    %v1401 = vadd.f32 %v1385, %v1325
    %v1402 = vadd.f32 %v1386, %v1330
    %v1403 = vadd.f32 %v1387, %v1333
    %v1404 = vadd.f32 %v1388, %v1338
    %v1405 = vadd.f32 %v1389, %v1341
    %v1406 = vadd.f32 %v1390, %v1346
    %v1407 = vadd.f32 %v1391, %v1349
    %v1408 = vadd.f32 %v1392, %v1354
    %v1409 = vadd.f32 %v1393, %v1357
    %v1410 = vadd.f32 %v1394, %v1362
    %v1411 = vadd.f32 %v1395, %v1365
    %v1412 = vadd.f32 %v1396, %v1370
    %v1413 = vadd.f32 %v1397, %v1373
    %v1414 = vadd.f32 %v1398, %v1378
    %v1415 = vadd.f32 %v1399, %v1381
    %v1416 = vadd.f32 %v1400, %v1401
    %v1417 = vadd.f32 %v1416, %v1402
    %v1418 = vadd.f32 %v1417, %v1403
    %v1419 = vadd.f32 %v1418, %v1404
    %v1420 = vadd.f32 %v1419, %v1405
    %v1421 = vadd.f32 %v1420, %v1406
    %v1422 = vadd.f32 %v1421, %v1407
    %v1423 = vadd.f32 %v1422, %v1408
    %v1424 = vadd.f32 %v1423, %v1409
    %v1425 = vadd.f32 %v1424, %v1410
    %v1426 = vadd.f32 %v1425, %v1411
    %v1427 = vadd.f32 %v1426, %v1412
    %v1428 = vadd.f32 %v1427, %v1413
    %v1429 = vadd.f32 %v1428, %v1414
    %v1430 = vadd.f32 %v1429, %v1415
    %v1431 = vrot.slane %v1430, 4
    %v1432 = vadd.f32 %v1430, %v1431
    %v1433 = vrot.slane %v1432, 2
    %v1434 = vadd.f32 %v1432, %v1433
    %v1435 = vrot.slane %v1434, 1
    %v1436 = vadd.f32 %v1434, %v1435
    %v1437 = vadd.f32 %v1436, 0.0
    %v1438 = vmul.f32 %v1400, %v1400
    %v1439 = vmul.f32 %v1401, %v1401
    %v1440 = vmul.f32 %v1402, %v1402
    %v1441 = vmul.f32 %v1403, %v1403
    %v1442 = vmul.f32 %v1404, %v1404
    %v1443 = vmul.f32 %v1405, %v1405
    %v1444 = vmul.f32 %v1406, %v1406
    %v1445 = vmul.f32 %v1407, %v1407
    %v1446 = vmul.f32 %v1408, %v1408
    %v1447 = vmul.f32 %v1409, %v1409
    %v1448 = vmul.f32 %v1410, %v1410
    %v1449 = vmul.f32 %v1411, %v1411
    %v1450 = vmul.f32 %v1412, %v1412
    %v1451 = vmul.f32 %v1413, %v1413
    %v1452 = vmul.f32 %v1414, %v1414
    %v1453 = vmul.f32 %v1415, %v1415
    %v1454 = vadd.f32 %v1438, %v1439
    %v1455 = vadd.f32 %v1454, %v1440
    %v1456 = vadd.f32 %v1455, %v1441
    %v1457 = vadd.f32 %v1456, %v1442
    %v1458 = vadd.f32 %v1457, %v1443
    %v1459 = vadd.f32 %v1458, %v1444
    %v1460 = vadd.f32 %v1459, %v1445
    %v1461 = vadd.f32 %v1460, %v1446
    %v1462 = vadd.f32 %v1461, %v1447
    %v1463 = vadd.f32 %v1462, %v1448
    %v1464 = vadd.f32 %v1463, %v1449
    %v1465 = vadd.f32 %v1464, %v1450
    %v1466 = vadd.f32 %v1465, %v1451
    %v1467 = vadd.f32 %v1466, %v1452
    %v1468 = vadd.f32 %v1467, %v1453
    %v1469 = vrot.slane %v1468, 4
    %v1470 = vadd.f32 %v1468, %v1469
    %v1471 = vrot.slane %v1470, 2
    %v1472 = vadd.f32 %v1470, %v1471
    %v1473 = vrot.slane %v1472, 1
    %v1474 = vadd.f32 %v1472, %v1473
    %v1475 = vadd.f32 %v1474, 0.0
    %1476 = vst [vmem:[#allocation8] sm:$0xff] %v1400
    %1477 = vst [vmem:[#allocation8 + $0x8] sm:$0xff] %v1401
    %1478 = vst [vmem:[#allocation8 + $0x10] sm:$0xff] %v1402
    %1479 = vst [vmem:[#allocation8 + $0x18] sm:$0xff] %v1403
    %1480 = vst [vmem:[#allocation8 + $0x20] sm:$0xff] %v1404
    %1481 = vst [vmem:[#allocation8 + $0x28] sm:$0xff] %v1405
    %1482 = vst [vmem:[#allocation8 + $0x30] sm:$0xff] %v1406
    %1483 = vst [vmem:[#allocation8 + $0x38] sm:$0xff] %v1407
    %1484 = vst [vmem:[#allocation8 + $0x40] sm:$0xff] %v1408
    %1485 = vst [vmem:[#allocation8 + $0x48] sm:$0xff] %v1409
    %1486 = vst [vmem:[#allocation8 + $0x50] sm:$0xff] %v1410
    %1487 = vst [vmem:[#allocation8 + $0x58] sm:$0xff] %v1411
    %1488 = vst [vmem:[#allocation8 + $0x60] sm:$0xff] %v1412
    %1489 = vst [vmem:[#allocation8 + $0x68] sm:$0xff] %v1413
    %1490 = vst [vmem:[#allocation8 + $0x70] sm:$0xff] %v1414
    %1491 = vst [vmem:[#allocation8 + $0x78] sm:$0xff] %v1415
    %1492 = vmatprep.subr.bf16.mxu0 0
    %1493 = vmatpush1.bf16.msra.mxu0 %v1278
    %1494 = vmatprep.subr.bf16.mxu0 0
    %1495 = vmatpush1.bf16.msra.mxu0 %v1277
    %1496 = vmatprep.subr.bf16.mxu0 0
    %1497 = vmatpush1.bf16.msra.mxu0 %v1276
    %1498 = vmatprep.subr.bf16.mxu0 0
    %1499 = vmatpush1.bf16.msra.mxu0 %v1275
    %1500 = vmatprep.subr.bf16.mxu0 0
    %1501 = vmatpush1.bf16.msra.mxu0 %v1274
    %1502 = vmatprep.subr.bf16.mxu0 0
    %1503 = vmatpush1.bf16.msra.mxu0 %v1273
    %1504 = vmatprep.subr.bf16.mxu0 0
    %1505 = vmatpush1.bf16.msra.mxu0 %v1272
    %1506 = vmatprep.subr.bf16.mxu0 0
    %1507 = vmatpush1.bf16.msra.mxu0 %v1271
    %1508 = vmatprep.subr.bf16.mxu0 0
    %1509 = vmatpush2.bf16.msra.mxu0 0
    %1510 = vmatprep.subr.bf16.mxu0 0
    %1511 = vmatpush2.bf16.msra.mxu0 0
    %1512 = vmatprep.subr.bf16.mxu0 0
    %1513 = vmatpush2.bf16.msra.mxu0 0
    %1514 = vmatprep.subr.bf16.mxu0 0
    %1515 = vmatpush2.bf16.msra.mxu0 0
    %1516 = vmatprep.subr.bf16.mxu0 0
    %1517 = vmatpush2.bf16.msra.mxu0 0
    %1518 = vmatprep.subr.bf16.mxu0 0
    %1519 = vmatpush2.bf16.msra.mxu0 0
    %1520 = vmatprep.subr.bf16.mxu0 0
    %1521 = vmatpush2.bf16.msra.mxu0 0
    %1522 = vmatprep.subr.bf16.mxu0 0
    %1523 = vmatpush2.bf16.msra.mxu0 0
    %1524 = vmatprep.mubr.bf16.mxu0 0
    %1525 = vmatmul.mubr.bf16.gmra.mxu0 %v1207
    %v1526 = vpop.f32.mrf.mxu0
    %v1527 = vadd.f32 0.0, %v1526
    %v1528 = vpop.f32.mrf.mxu0
    %v1529 = vpop.f32.mrf.mxu0
    %v1530 = vadd.f32 0.0, %v1529
    %v1531 = vpop.f32.mrf.mxu0
    %1532 = vmatprep.mubr.bf16.mxu0 0
    %1533 = vmatmul.mubr.bf16.gmra.mxu0 %v1209
    %v1534 = vpop.f32.mrf.mxu0
    %v1535 = vadd.f32 0.0, %v1534
    %v1536 = vpop.f32.mrf.mxu0
    %v1537 = vpop.f32.mrf.mxu0
    %v1538 = vadd.f32 0.0, %v1537
    %v1539 = vpop.f32.mrf.mxu0
    %1540 = vmatprep.mubr.bf16.mxu0 0
    %1541 = vmatmul.mubr.bf16.gmra.mxu0 %v1211
    %v1542 = vpop.f32.mrf.mxu0
    %v1543 = vadd.f32 0.0, %v1542
    %v1544 = vpop.f32.mrf.mxu0
    %v1545 = vpop.f32.mrf.mxu0
    %v1546 = vadd.f32 0.0, %v1545
    %v1547 = vpop.f32.mrf.mxu0
    %1548 = vmatprep.mubr.bf16.mxu0 0
    %1549 = vmatmul.mubr.bf16.gmra.mxu0 %v1213
    %v1550 = vpop.f32.mrf.mxu0
    %v1551 = vadd.f32 0.0, %v1550
    %v1552 = vpop.f32.mrf.mxu0
    %v1553 = vpop.f32.mrf.mxu0
    %v1554 = vadd.f32 0.0, %v1553
    %v1555 = vpop.f32.mrf.mxu0
    %1556 = vmatprep.mubr.bf16.mxu0 0
    %1557 = vmatmul.mubr.bf16.gmra.mxu0 %v1215
    %v1558 = vpop.f32.mrf.mxu0
    %v1559 = vadd.f32 0.0, %v1558
    %v1560 = vpop.f32.mrf.mxu0
    %v1561 = vpop.f32.mrf.mxu0
    %v1562 = vadd.f32 0.0, %v1561
    %v1563 = vpop.f32.mrf.mxu0
    %1564 = vmatprep.mubr.bf16.mxu0 0
    %1565 = vmatmul.mubr.bf16.gmra.mxu0 %v1217
    %v1566 = vpop.f32.mrf.mxu0
    %v1567 = vadd.f32 0.0, %v1566
    %v1568 = vpop.f32.mrf.mxu0
    %v1569 = vpop.f32.mrf.mxu0
    %v1570 = vadd.f32 0.0, %v1569
    %v1571 = vpop.f32.mrf.mxu0
    %1572 = vmatprep.mubr.bf16.mxu0 0
    %1573 = vmatmul.mubr.bf16.gmra.mxu0 %v1219
    %v1574 = vpop.f32.mrf.mxu0
    %v1575 = vadd.f32 0.0, %v1574
    %v1576 = vpop.f32.mrf.mxu0
    %v1577 = vpop.f32.mrf.mxu0
    %v1578 = vadd.f32 0.0, %v1577
    %v1579 = vpop.f32.mrf.mxu0
    %1580 = vmatprep.mubr.bf16.mxu0 0
    %1581 = vmatmul.mubr.bf16.gmra.mxu0 %v1221
    %v1582 = vpop.f32.mrf.mxu0
    %v1583 = vadd.f32 0.0, %v1582
    %v1584 = vpop.f32.mrf.mxu0
    %v1585 = vpop.f32.mrf.mxu0
    %v1586 = vadd.f32 0.0, %v1585
    %v1587 = vpop.f32.mrf.mxu0
    %1588 = vdwg.mxu0
    %v1589 = vld [vmem:[#allocation8 + $0x80] sm:$0xff]
    %v1590 = vld [vmem:[#allocation8 + $0x88] sm:$0xff]
    %v1591 = vld [vmem:[#allocation8 + $0x90] sm:$0xff]
    %v1592 = vld [vmem:[#allocation8 + $0x98] sm:$0xff]
    %v1593 = vld [vmem:[#allocation8 + $0xa0] sm:$0xff]
    %v1594 = vld [vmem:[#allocation8 + $0xa8] sm:$0xff]
    %v1595 = vld [vmem:[#allocation8 + $0xb0] sm:$0xff]
    %v1596 = vld [vmem:[#allocation8 + $0xb8] sm:$0xff]
    %v1597 = vld [vmem:[#allocation8 + $0xc0] sm:$0xff]
    %v1598 = vld [vmem:[#allocation8 + $0xc8] sm:$0xff]
    %v1599 = vld [vmem:[#allocation8 + $0xd0] sm:$0xff]
    %v1600 = vld [vmem:[#allocation8 + $0xd8] sm:$0xff]
    %v1601 = vld [vmem:[#allocation8 + $0xe0] sm:$0xff]
    %v1602 = vld [vmem:[#allocation8 + $0xe8] sm:$0xff]
    %v1603 = vld [vmem:[#allocation8 + $0xf0] sm:$0xff]
    %v1604 = vld [vmem:[#allocation8 + $0xf8] sm:$0xff]
    %v1605 = vadd.f32 %v1589, %v1527
    %v1606 = vadd.f32 %v1590, %v1530
    %v1607 = vadd.f32 %v1591, %v1535
    %v1608 = vadd.f32 %v1592, %v1538
    %v1609 = vadd.f32 %v1593, %v1543
    %v1610 = vadd.f32 %v1594, %v1546
    %v1611 = vadd.f32 %v1595, %v1551
    %v1612 = vadd.f32 %v1596, %v1554
    %v1613 = vadd.f32 %v1597, %v1559
    %v1614 = vadd.f32 %v1598, %v1562
    %v1615 = vadd.f32 %v1599, %v1567
    %v1616 = vadd.f32 %v1600, %v1570
    %v1617 = vadd.f32 %v1601, %v1575
    %v1618 = vadd.f32 %v1602, %v1578
    %v1619 = vadd.f32 %v1603, %v1583
    %v1620 = vadd.f32 %v1604, %v1586
    %v1621 = vadd.f32 %v1605, %v1606
    %v1622 = vadd.f32 %v1621, %v1607
    %v1623 = vadd.f32 %v1622, %v1608
    %v1624 = vadd.f32 %v1623, %v1609
    %v1625 = vadd.f32 %v1624, %v1610
    %v1626 = vadd.f32 %v1625, %v1611
    %v1627 = vadd.f32 %v1626, %v1612
    %v1628 = vadd.f32 %v1627, %v1613
    %v1629 = vadd.f32 %v1628, %v1614
    %v1630 = vadd.f32 %v1629, %v1615
    %v1631 = vadd.f32 %v1630, %v1616
    %v1632 = vadd.f32 %v1631, %v1617
    %v1633 = vadd.f32 %v1632, %v1618
    %v1634 = vadd.f32 %v1633, %v1619
    %v1635 = vadd.f32 %v1634, %v1620
    %v1636 = vrot.slane %v1635, 4
    %v1637 = vadd.f32 %v1635, %v1636
    %v1638 = vrot.slane %v1637, 2
    %v1639 = vadd.f32 %v1637, %v1638
    %v1640 = vrot.slane %v1639, 1
    %v1641 = vadd.f32 %v1639, %v1640
    %v1642 = vadd.f32 %v1437, %v1641
    %v1643 = vmul.f32 %v1605, %v1605
    %v1644 = vmul.f32 %v1606, %v1606
    %v1645 = vmul.f32 %v1607, %v1607
    %v1646 = vmul.f32 %v1608, %v1608
    %v1647 = vmul.f32 %v1609, %v1609
    %v1648 = vmul.f32 %v1610, %v1610
    %v1649 = vmul.f32 %v1611, %v1611
    %v1650 = vmul.f32 %v1612, %v1612
    %v1651 = vmul.f32 %v1613, %v1613
    %v1652 = vmul.f32 %v1614, %v1614
    %v1653 = vmul.f32 %v1615, %v1615
    %v1654 = vmul.f32 %v1616, %v1616
    %v1655 = vmul.f32 %v1617, %v1617
    %v1656 = vmul.f32 %v1618, %v1618
    %v1657 = vmul.f32 %v1619, %v1619
    %v1658 = vmul.f32 %v1620, %v1620
    %v1659 = vadd.f32 %v1643, %v1644
    %v1660 = vadd.f32 %v1659, %v1645
    %v1661 = vadd.f32 %v1660, %v1646
    %v1662 = vadd.f32 %v1661, %v1647
    %v1663 = vadd.f32 %v1662, %v1648
    %v1664 = vadd.f32 %v1663, %v1649
    %v1665 = vadd.f32 %v1664, %v1650
    %v1666 = vadd.f32 %v1665, %v1651
    %v1667 = vadd.f32 %v1666, %v1652
    %v1668 = vadd.f32 %v1667, %v1653
    %v1669 = vadd.f32 %v1668, %v1654
    %v1670 = vadd.f32 %v1669, %v1655
    %v1671 = vadd.f32 %v1670, %v1656
    %v1672 = vadd.f32 %v1671, %v1657
    %v1673 = vadd.f32 %v1672, %v1658
    %v1674 = vrot.slane %v1673, 4
    %v1675 = vadd.f32 %v1673, %v1674
    %v1676 = vrot.slane %v1675, 2
    %v1677 = vadd.f32 %v1675, %v1676
    %v1678 = vrot.slane %v1677, 1
    %v1679 = vadd.f32 %v1677, %v1678
    %v1680 = vadd.f32 %v1475, %v1679
    %1681 = vst [vmem:[#allocation8 + $0x80] sm:$0xff] %v1605
    %1682 = vst [vmem:[#allocation8 + $0x88] sm:$0xff] %v1606
    %1683 = vst [vmem:[#allocation8 + $0x90] sm:$0xff] %v1607
    %1684 = vst [vmem:[#allocation8 + $0x98] sm:$0xff] %v1608
    %1685 = vst [vmem:[#allocation8 + $0xa0] sm:$0xff] %v1609
    %1686 = vst [vmem:[#allocation8 + $0xa8] sm:$0xff] %v1610
    %1687 = vst [vmem:[#allocation8 + $0xb0] sm:$0xff] %v1611
    %1688 = vst [vmem:[#allocation8 + $0xb8] sm:$0xff] %v1612
    %1689 = vst [vmem:[#allocation8 + $0xc0] sm:$0xff] %v1613
    %1690 = vst [vmem:[#allocation8 + $0xc8] sm:$0xff] %v1614
    %1691 = vst [vmem:[#allocation8 + $0xd0] sm:$0xff] %v1615
    %1692 = vst [vmem:[#allocation8 + $0xd8] sm:$0xff] %v1616
    %1693 = vst [vmem:[#allocation8 + $0xe0] sm:$0xff] %v1617
    %1694 = vst [vmem:[#allocation8 + $0xe8] sm:$0xff] %v1618
    %1695 = vst [vmem:[#allocation8 + $0xf0] sm:$0xff] %v1619
    %1696 = vst [vmem:[#allocation8 + $0xf8] sm:$0xff] %v1620
    %v1697 = vmul.f32 %v1642, 0.00390625
    %v1698 = vmul.f32 %v1680, 0.00390625
    %v1699 = vmul.f32 %v1697, %v1697
    %v1700 = vsub.f32 %v1698, %v1699
    %v1701 = vmax.f32 %v1700, 0.0
    %v1702 = vadd.f32 %v1701, 1e-05
    %v1703 = vrsqrt.pop %v1702
    %v1704 = vld [vmem:[%s3] sm:$0x1]
    %v1705 = vmul.f32 %v1703, %v1704
    %v1706 = vld [vmem:[%s4] sm:$0x1]
    %v1707 = vmul.f32 %v1697, %v1705
    %v1708 = vsub.f32 %v1706, %v1707
    %v1709 = vld [vmem:[#allocation8] sm:$0xff]
    %v1710 = vld [vmem:[#allocation8 + $0x8] sm:$0xff]
    %v1711 = vld [vmem:[#allocation8 + $0x10] sm:$0xff]
    %v1712 = vld [vmem:[#allocation8 + $0x18] sm:$0xff]
    %v1713 = vld [vmem:[#allocation8 + $0x20] sm:$0xff]
    %v1714 = vld [vmem:[#allocation8 + $0x28] sm:$0xff]
    %v1715 = vld [vmem:[#allocation8 + $0x30] sm:$0xff]
    %v1716 = vld [vmem:[#allocation8 + $0x38] sm:$0xff]
    %v1717 = vld [vmem:[#allocation8 + $0x40] sm:$0xff]
    %v1718 = vld [vmem:[#allocation8 + $0x48] sm:$0xff]
    %v1719 = vld [vmem:[#allocation8 + $0x50] sm:$0xff]
    %v1720 = vld [vmem:[#allocation8 + $0x58] sm:$0xff]
    %v1721 = vld [vmem:[#allocation8 + $0x60] sm:$0xff]
    %v1722 = vld [vmem:[#allocation8 + $0x68] sm:$0xff]
    %v1723 = vld [vmem:[#allocation8 + $0x70] sm:$0xff]
    %v1724 = vld [vmem:[#allocation8 + $0x78] sm:$0xff]
    %v1725 = vld [vmem:[#allocation8 + $0x80] sm:$0xff]
    %v1726 = vld [vmem:[#allocation8 + $0x88] sm:$0xff]
    %v1727 = vld [vmem:[#allocation8 + $0x90] sm:$0xff]
    %v1728 = vld [vmem:[#allocation8 + $0x98] sm:$0xff]
    %v1729 = vld [vmem:[#allocation8 + $0xa0] sm:$0xff]
    %v1730 = vld [vmem:[#allocation8 + $0xa8] sm:$0xff]
    %v1731 = vld [vmem:[#allocation8 + $0xb0] sm:$0xff]
    %v1732 = vld [vmem:[#allocation8 + $0xb8] sm:$0xff]
    %v1733 = vld [vmem:[#allocation8 + $0xc0] sm:$0xff]
    %v1734 = vld [vmem:[#allocation8 + $0xc8] sm:$0xff]
    %v1735 = vld [vmem:[#allocation8 + $0xd0] sm:$0xff]
    %v1736 = vld [vmem:[#allocation8 + $0xd8] sm:$0xff]
    %v1737 = vld [vmem:[#allocation8 + $0xe0] sm:$0xff]
    %v1738 = vld [vmem:[#allocation8 + $0xe8] sm:$0xff]
    %v1739 = vld [vmem:[#allocation8 + $0xf0] sm:$0xff]
    %v1740 = vld [vmem:[#allocation8 + $0xf8] sm:$0xff]
    %v1741 = vlaneseq
    %v1742 = vshrl.u32 %v1741, 7
    %v1743 = vsub.s32 0, %v1742
    %v1744 = vrot.slane %v1705, %v1743
    %v1745 = vmul.f32 %v1709, %v1744
    %v1746 = vmul.f32 %v1710, %v1744
    %v1747 = vmul.f32 %v1711, %v1744
    %v1748 = vmul.f32 %v1712, %v1744
    %v1749 = vmul.f32 %v1713, %v1744
    %v1750 = vmul.f32 %v1714, %v1744
    %v1751 = vmul.f32 %v1715, %v1744
    %v1752 = vmul.f32 %v1716, %v1744
    %v1753 = vmul.f32 %v1717, %v1744
    %v1754 = vmul.f32 %v1718, %v1744
    %v1755 = vmul.f32 %v1719, %v1744
    %v1756 = vmul.f32 %v1720, %v1744
    %v1757 = vmul.f32 %v1721, %v1744
    %v1758 = vmul.f32 %v1722, %v1744
    %v1759 = vmul.f32 %v1723, %v1744
    %v1760 = vmul.f32 %v1724, %v1744
    %v1761 = vmul.f32 %v1725, %v1744
    %v1762 = vmul.f32 %v1726, %v1744
    %v1763 = vmul.f32 %v1727, %v1744
    %v1764 = vmul.f32 %v1728, %v1744
    %v1765 = vmul.f32 %v1729, %v1744
    %v1766 = vmul.f32 %v1730, %v1744
    %v1767 = vmul.f32 %v1731, %v1744
    %v1768 = vmul.f32 %v1732, %v1744
    %v1769 = vmul.f32 %v1733, %v1744
    %v1770 = vmul.f32 %v1734, %v1744
    %v1771 = vmul.f32 %v1735, %v1744
    %v1772 = vmul.f32 %v1736, %v1744
    %v1773 = vmul.f32 %v1737, %v1744
    %v1774 = vmul.f32 %v1738, %v1744
    %v1775 = vmul.f32 %v1739, %v1744
    %v1776 = vmul.f32 %v1740, %v1744
    %v1778 = vlaneseq
    %v1779 = vshrl.u32 %v1778, 7
    %v1780 = vsub.s32 0, %v1779
    %v1781 = vrot.slane %v1708, %v1780
    %v1783 = vadd.f32 %v1745, %v1781
    %v1784 = vadd.f32 %v1746, %v1781
    %v1785 = vadd.f32 %v1747, %v1781
    %v1786 = vadd.f32 %v1748, %v1781
    %v1787 = vadd.f32 %v1749, %v1781
    %v1788 = vadd.f32 %v1750, %v1781
    %v1789 = vadd.f32 %v1751, %v1781
    %v1790 = vadd.f32 %v1752, %v1781
    %v1791 = vadd.f32 %v1753, %v1781
    %v1792 = vadd.f32 %v1754, %v1781
    %v1793 = vadd.f32 %v1755, %v1781
    %v1794 = vadd.f32 %v1756, %v1781
    %v1795 = vadd.f32 %v1757, %v1781
    %v1796 = vadd.f32 %v1758, %v1781
    %v1797 = vadd.f32 %v1759, %v1781
    %v1798 = vadd.f32 %v1760, %v1781
    %v1799 = vadd.f32 %v1761, %v1781
    %v1800 = vadd.f32 %v1762, %v1781
    %v1801 = vadd.f32 %v1763, %v1781
    %v1802 = vadd.f32 %v1764, %v1781
    %v1803 = vadd.f32 %v1765, %v1781
    %v1804 = vadd.f32 %v1766, %v1781
    %v1805 = vadd.f32 %v1767, %v1781
    %v1806 = vadd.f32 %v1768, %v1781
    %v1807 = vadd.f32 %v1769, %v1781
    %v1808 = vadd.f32 %v1770, %v1781
    %v1809 = vadd.f32 %v1771, %v1781
    %v1810 = vadd.f32 %v1772, %v1781
    %v1811 = vadd.f32 %v1773, %v1781
    %v1812 = vadd.f32 %v1774, %v1781
    %v1813 = vadd.f32 %v1775, %v1781
    %v1814 = vadd.f32 %v1776, %v1781
    %v1815 = vmax.f32 %v1783, 0.0
    %v1816 = vmax.f32 %v1784, 0.0
    %v1817 = vmax.f32 %v1785, 0.0
    %v1818 = vmax.f32 %v1786, 0.0
    %v1819 = vmax.f32 %v1787, 0.0
    %v1820 = vmax.f32 %v1788, 0.0
    %v1821 = vmax.f32 %v1789, 0.0
    %v1822 = vmax.f32 %v1790, 0.0
    %v1823 = vmax.f32 %v1791, 0.0
    %v1824 = vmax.f32 %v1792, 0.0
    %v1825 = vmax.f32 %v1793, 0.0
    %v1826 = vmax.f32 %v1794, 0.0
    %v1827 = vmax.f32 %v1795, 0.0
    %v1828 = vmax.f32 %v1796, 0.0
    %v1829 = vmax.f32 %v1797, 0.0
    %v1830 = vmax.f32 %v1798, 0.0
    %v1831 = vmax.f32 %v1799, 0.0
    %v1832 = vmax.f32 %v1800, 0.0
    %v1833 = vmax.f32 %v1801, 0.0
    %v1834 = vmax.f32 %v1802, 0.0
    %v1835 = vmax.f32 %v1803, 0.0
    %v1836 = vmax.f32 %v1804, 0.0
    %v1837 = vmax.f32 %v1805, 0.0
    %v1838 = vmax.f32 %v1806, 0.0
    %v1839 = vmax.f32 %v1807, 0.0
    %v1840 = vmax.f32 %v1808, 0.0
    %v1841 = vmax.f32 %v1809, 0.0
    %v1842 = vmax.f32 %v1810, 0.0
    %v1843 = vmax.f32 %v1811, 0.0
    %v1844 = vmax.f32 %v1812, 0.0
    %v1845 = vmax.f32 %v1813, 0.0
    %v1846 = vmax.f32 %v1814, 0.0
    %1847 = vst [vmem:[#allocation8] sm:$0xff] %v1815
    %1848 = vst [vmem:[#allocation8 + $0x8] sm:$0xff] %v1816
    %1849 = vst [vmem:[#allocation8 + $0x10] sm:$0xff] %v1817
    %1850 = vst [vmem:[#allocation8 + $0x18] sm:$0xff] %v1818
    %1851 = vst [vmem:[#allocation8 + $0x20] sm:$0xff] %v1819
    %1852 = vst [vmem:[#allocation8 + $0x28] sm:$0xff] %v1820
    %1853 = vst [vmem:[#allocation8 + $0x30] sm:$0xff] %v1821
    %1854 = vst [vmem:[#allocation8 + $0x38] sm:$0xff] %v1822
    %1855 = vst [vmem:[#allocation8 + $0x40] sm:$0xff] %v1823
    %1856 = vst [vmem:[#allocation8 + $0x48] sm:$0xff] %v1824
    %1857 = vst [vmem:[#allocation8 + $0x50] sm:$0xff] %v1825
    %1858 = vst [vmem:[#allocation8 + $0x58] sm:$0xff] %v1826
    %1859 = vst [vmem:[#allocation8 + $0x60] sm:$0xff] %v1827
    %1860 = vst [vmem:[#allocation8 + $0x68] sm:$0xff] %v1828
    %1861 = vst [vmem:[#allocation8 + $0x70] sm:$0xff] %v1829
    %1862 = vst [vmem:[#allocation8 + $0x78] sm:$0xff] %v1830
    %1863 = vst [vmem:[#allocation8 + $0x80] sm:$0xff] %v1831
    %1864 = vst [vmem:[#allocation8 + $0x88] sm:$0xff] %v1832
    %1865 = vst [vmem:[#allocation8 + $0x90] sm:$0xff] %v1833
    %1866 = vst [vmem:[#allocation8 + $0x98] sm:$0xff] %v1834
    %1867 = vst [vmem:[#allocation8 + $0xa0] sm:$0xff] %v1835
    %1868 = vst [vmem:[#allocation8 + $0xa8] sm:$0xff] %v1836
    %1869 = vst [vmem:[#allocation8 + $0xb0] sm:$0xff] %v1837
    %1870 = vst [vmem:[#allocation8 + $0xb8] sm:$0xff] %v1838
    %1871 = vst [vmem:[#allocation8 + $0xc0] sm:$0xff] %v1839
    %1872 = vst [vmem:[#allocation8 + $0xc8] sm:$0xff] %v1840
    %1873 = vst [vmem:[#allocation8 + $0xd0] sm:$0xff] %v1841
    %1874 = vst [vmem:[#allocation8 + $0xd8] sm:$0xff] %v1842
    %1875 = vst [vmem:[#allocation8 + $0xe0] sm:$0xff] %v1843
    %1876 = vst [vmem:[#allocation8 + $0xe8] sm:$0xff] %v1844
    %1877 = vst [vmem:[#allocation8 + $0xf0] sm:$0xff] %v1845
    %1878 = vst [vmem:[#allocation8 + $0xf8] sm:$0xff] %v1846
    // Predicated region
    $region34: #{tpu_custom_call.1} parent=1 // pred_check
      _
    $region35: #{tpu_custom_call.1} parent=1 // pred_check_branch
      %1880 = sbr.rel (0) target = $region37
    $region36: #{tpu_custom_call.1} parent=1 // pred_region
      %s1882 = ssub.s32 4096, 4096
      %1883 = vsyncadd [#allocation4], %s1882
      %s1884 = sshll.u32 [#allocation8], 4
      %s1885 = int_to_ptr.vmem [resolvable:$true] %s1884
      %1890 = dma.vmem_to_hbm [thread:$0]  %s1885, 4096, %s5, [#allocation4], 128, 128, 8
    $region37: #{tpu_custom_call.1} parent=1 // pred_fallthru
      _
    // Predicated region
    $region38: #{tpu_custom_call.1} parent=1 // pred_check
      _
    $region39: #{tpu_custom_call.1} parent=1 // pred_check_branch
      %1892 = sbr.rel (0) target = $region41
    $region40: #{tpu_custom_call.1} parent=1 // pred_region
      %1893 = dma.done [#allocation4], 4096
    $region41: #{tpu_custom_call.1} parent=1 // pred_fallthru
      _
    %1894 = vsyncpa [#allocation3], 1
    %1895 = vsyncpa [#allocation6], 1
    %1896 = vsyncpa [#allocation4], 1

</llo_original>
